<compile_context>
chip_gen: v7x
topology: tpu7x:2x2x1
jax: 0.10.0
libtpu: 0.0.40
codegen_flags: <defaults>
</compile_context>

<pallas_src>
import functools
import math

import jax
import jax.numpy as jnp
from jax.experimental import pallas as pl
from jax.experimental.pallas import tpu as pltpu

LN_EPS = 1e-5


def _layer_norm(t, w, b):
    mu = jnp.mean(t, axis=-1, keepdims=True)
    var = jnp.mean((t - mu) ** 2, axis=-1, keepdims=True)
    return (t - mu) * jax.lax.rsqrt(var + LN_EPS) * w + b


def _attention_block_kernel(num_heads, head_dim, tq, ckv,
                            xq_ref, xs_ref,
                            wq_ref, wk_ref, wv_ref, bq_ref, bk_ref, bv_ref,
                            wo_ref, bo_ref, ln1w_ref, ln1b_ref,
                            w1_ref, b1_ref, w2_ref, b2_ref, ln2w_ref, ln2b_ref,
                            o_ref,
                            k_scr, v_scr, q_scr, ao_scr):
    H, hd = num_heads, head_dim
    S = xs_ref.shape[1]
    qi = pl.program_id(1)
    bf16 = jnp.bfloat16

    # ---- once per batch element (qi == 0): project K, V for the full sequence,
    #      chunked over S, writing bf16 results straight into the head-split VMEM
    #      scratch. The q-tile axis is sequential, so the scratch carries across the
    #      remaining tiles of this batch element. ----
    @pl.when(qi == 0)
    def _():
        n_kv = S // ckv

        def kv_body(c, carry):
            start = pl.multiple_of(c * ckv, ckv)
            xs_c = xs_ref[0, pl.ds(start, ckv), :]                       # bf16 (ckv, E)
            k2d = jnp.dot(xs_c, wk_ref[...],
                          preferred_element_type=jnp.float32) + bk_ref[...]
            v2d = jnp.dot(xs_c, wv_ref[...],
                          preferred_element_type=jnp.float32) + bv_ref[...]
            for h in range(H):                                           # head split via
                sl = slice(h * hd, (h + 1) * hd)                         # slice-copies
                k_scr[h, pl.ds(start, ckv), :] = k2d[:, sl].astype(bf16)
                v_scr[h, pl.ds(start, ckv), :] = v2d[:, sl].astype(bf16)
            return carry

        jax.lax.fori_loop(0, n_kv, kv_body, 0)

    # ---- per query tile: Q projection (bf16 operands, f32 accumulation) ----
    x_q = xq_ref[0]                                                      # (tq, E) f32 residual
    q2d = jnp.dot(x_q.astype(bf16), wq_ref[...],
                  preferred_element_type=jnp.float32) + bq_ref[...]
    q2d = q2d * (1.0 / math.sqrt(hd))
    for h in range(H):                                                   # head split of Q
        q_scr[h] = q2d[:, h * hd:(h + 1) * hd].astype(bf16)

    # ---- attention: head-batched matmuls (single MXU sequence, no per-head dots) ----
    s = jnp.einsum('hqd,hkd->hqk', q_scr[...], k_scr[...],
                   preferred_element_type=jnp.float32)                   # (H, tq, S)
    s = s - jnp.max(s, axis=-1, keepdims=True)
    p = jnp.exp(s)
    p = p * pl.reciprocal(jnp.sum(p, axis=-1, keepdims=True), approx=True)
    ah = jnp.einsum('hqk,hkd->hqd', p.astype(bf16), v_scr[...],
                    preferred_element_type=jnp.float32)                  # (H, tq, hd)

    # merge heads into a (tq, E) VMEM slab (no lane-dim concatenate)
    for h in range(H):
        ao_scr[:, h * hd:(h + 1) * hd] = ah[h].astype(bf16)

    attn = jnp.dot(ao_scr[...], wo_ref[...],
                   preferred_element_type=jnp.float32) + bo_ref[...]     # (tq, E)

    # ---- residual + LayerNorm 1 (f32 on the VPU) ----
    h1 = _layer_norm(x_q + attn, ln1w_ref[...], ln1b_ref[...])

    # ---- FFN: Linear(E, 4E) -> ReLU -> Linear(4E, E) ----
    f = jnp.dot(h1.astype(bf16), w1_ref[...],
                preferred_element_type=jnp.float32) + b1_ref[...]
    f = jnp.maximum(f, 0.0)
    f = jnp.dot(f.astype(bf16), w2_ref[...],
                preferred_element_type=jnp.float32) + b2_ref[...]

    # ---- residual + LayerNorm 2 ----
    h2 = _layer_norm(h1 + f, ln2w_ref[...], ln2b_ref[...])
    o_ref[0] = h2.astype(o_ref.dtype)


def _vmem_capacity_bytes():
    try:
        cap = getattr(pltpu.get_tpu_info(), "vmem_capacity_bytes", None)
        if cap:
            return int(cap)
    except Exception:
        pass
    return 64 * 1024 * 1024     # conservative default (v7x per-TensorCore VMEM)


def _pick_q_tile(seq_len, num_heads, q_tile, score_budget_bytes):
    if (q_tile is not None and seq_len % q_tile == 0
            and (q_tile % 8 == 0 or q_tile == seq_len)):
        return q_tile
    cands = [c for c in (256, 128, 64, 32, 16, 8) if seq_len % c == 0]
    if not cands:
        return seq_len
    for c in cands:                      # largest tile whose (H,tq,S) score slab fits budget
        if 2 * num_heads * c * seq_len * 4 <= score_budget_bytes:
            return c
    return cands[-1]


def _pick_kv_chunk(seq_len):
    for c in (512, 256, 128, 64, 32, 16, 8):
        if seq_len % c == 0:
            return c
    return seq_len


def attention_block(x, params, num_heads, q_tile=None):
    """x: (B, S, E) float32, batch-first. params: PyTorch-convention weights."""
    B, S, E = x.shape
    head_dim = E // num_heads
    assert head_dim * num_heads == E, "embed_dim must be divisible by num_heads"

    vmem_cap = _vmem_capacity_bytes()
    # Bound the f32 score/prob slab (~2 live copies of (H, tq, S)) to ~1/4 of VMEM.
    score_budget = max(vmem_cap // 4, 8 * 1024 * 1024)
    tq = _pick_q_tile(S, num_heads, q_tile, score_budget)
    n_q = S // tq
    ckv = _pick_kv_chunk(S)
    # Single-buffer the full-seq x on small-VMEM parts (v7x); double-buffer elsewhere.
    xs_bufs = 1 if vmem_cap <= 96 * 1024 * 1024 else 2

    bf16, f32 = jnp.bfloat16, jnp.float32
    w_in = params["in_proj_weight"]             # (3E, E) rows = [Wq; Wk; Wv]
    b_in = params["in_proj_bias"]               # (3E,)

    # Pre-transpose so the kernel does x @ W; cast matmul weights to bf16 (MXU path,
    # f32 accumulation in-kernel). Biases / LN params stay f32, lifted to 2-D.
    wq = w_in[:E].T.astype(bf16)
    wk = w_in[E:2 * E].T.astype(bf16)
    wv = w_in[2 * E:].T.astype(bf16)
    bq = b_in[None, :E].astype(f32)
    bk = b_in[None, E:2 * E].astype(f32)
    bv = b_in[None, 2 * E:].astype(f32)
    wo = params["out_proj_weight"].T.astype(bf16)
    bo = params["out_proj_bias"][None, :].astype(f32)
    ln1w = params["ln1_weight"][None, :].astype(f32)
    ln1b = params["ln1_bias"][None, :].astype(f32)
    w1 = params["ff1_weight"].T.astype(bf16)    # (E, 4E)
    b1 = params["ff1_bias"][None, :].astype(f32)
    w2 = params["ff2_weight"].T.astype(bf16)    # (4E, E)
    b2 = params["ff2_bias"][None, :].astype(f32)
    ln2w = params["ln2_weight"][None, :].astype(f32)
    ln2b = params["ln2_bias"][None, :].astype(f32)

    weights = [wq, wk, wv, bq, bk, bv, wo, bo, ln1w, ln1b,
               w1, b1, w2, b2, ln2w, ln2b]

    def const_spec(arr):
        # Whole-array block with a constant index -> fetched once; single-buffered to
        # halve resident-weight VMEM (matters on v7x's 64 MiB VMEM).
        zeros = (0,) * arr.ndim
        return pl.BlockSpec(arr.shape, lambda b, qi, z=zeros: z,
                            pipeline_mode=pl.Buffered(1))

    # ---- VMEM budget (bf16 xs, chunked K/V projection), clamped to device capacity ----
    nbytes = lambda a: a.size * a.dtype.itemsize
    w_bytes = sum(nbytes(w) for w in weights)
    xs_bytes = xs_bufs * S * E * 2                       # bf16 full-seq K/V source
    tile_bytes = 2 * 2 * tq * E * 4                      # xq + out tiles, double-buffered
    scr_bytes = (2 * num_heads * S * head_dim            # K/V scratch (bf16)
                 + num_heads * tq * head_dim             # Q scratch (bf16)
                 + tq * E) * 2                           # merged heads (bf16)
    act_bytes = 4 * (2 * num_heads * tq * S              # s + p slabs (f32)
                     + 2 * 4 * tq * E                    # FFN hidden (f32)
                     + 2 * ckv * E                       # chunked K/V projections (f32)
                     + 8 * tq * E)                       # misc in-flight activations
    vmem_limit = int(1.3 * (w_bytes + xs_bytes + tile_bytes + scr_bytes + act_bytes))
    vmem_limit = min(max(vmem_limit, 32 * 1024 * 1024), int(0.9 * vmem_cap))

    # ---- cost estimate so XLA does not treat the custom call as zero-cost ----
    flops = 2 * B * S * (12 * E * E + 2 * S * E)         # QKV/out/FFN + QK^T + PV
    cost = pl.CostEstimate(
        flops=int(flops),
        transcendentals=int(B * num_heads * S * S),      # softmax exp
        bytes_accessed=int(B * S * E * (4 + 2 + 4) + w_bytes),
    )

    kernel = functools.partial(_attention_block_kernel, num_heads, head_dim, tq, ckv)

    return pl.pallas_call(
        kernel,
        out_shape=jax.ShapeDtypeStruct((B, S, E), x.dtype),
        grid_spec=pltpu.PrefetchScalarGridSpec(
            num_scalar_prefetch=0,
            grid=(B, n_q),
            in_specs=[
                pl.BlockSpec((1, tq, E), lambda b, qi: (b, qi, 0)),   # f32 query tile
                pl.BlockSpec((1, S, E), lambda b, qi: (b, 0, 0),      # bf16 full x (K/V src)
                             pipeline_mode=pl.Buffered(xs_bufs)),
            ] + [const_spec(w) for w in weights],
            out_specs=pl.BlockSpec((1, tq, E), lambda b, qi: (b, qi, 0)),
            scratch_shapes=[
                pltpu.VMEM((num_heads, S, head_dim), bf16),           # K cache (head-split)
                pltpu.VMEM((num_heads, S, head_dim), bf16),           # V cache (head-split)
                pltpu.VMEM((num_heads, tq, head_dim), bf16),          # Q (head-split)
                pltpu.VMEM((tq, E), bf16),                            # merged attention heads
            ],
        ),
        compiler_params=pltpu.CompilerParams(
            # batch axis shards across TensorCores (v7x megacore); the q-tile axis is
            # sequential because it carries the K/V scratch.
            dimension_semantics=("parallel", "arbitrary"),
            vmem_limit_bytes=vmem_limit,
        ),
        cost_estimate=cost,
    )(x, x.astype(bf16), *weights)


def attention_block_ref(x, params, num_heads):
    """Pure-JAX f32 reference matching PyTorch nn.MultiheadAttention + block semantics."""
    B, S, E = x.shape
    head_dim = E // num_heads
    qkv = jnp.einsum("bse,fe->bsf", x, params["in_proj_weight"]) + params["in_proj_bias"]
    q, k, v = qkv[..., :E], qkv[..., E:2 * E], qkv[..., 2 * E:]

    def split(t):  # (B, S, E) -> (B, H, S, hd)
        return t.reshape(B, S, num_heads, head_dim).transpose(0, 2, 1, 3)

    q, k, v = split(q) / math.sqrt(head_dim), split(k), split(v)
    s = jnp.einsum("bhqd,bhkd->bhqk", q, k)
    p = jax.nn.softmax(s, axis=-1)
    a = jnp.einsum("bhqk,bhkd->bhqd", p, v).transpose(0, 2, 1, 3).reshape(B, S, E)
    a = jnp.einsum("bse,fe->bsf", a, params["out_proj_weight"]) + params["out_proj_bias"]

    def ln(t, w, b):
        mu = jnp.mean(t, axis=-1, keepdims=True)
        var = jnp.mean((t - mu) ** 2, axis=-1, keepdims=True)
        return (t - mu) * jax.lax.rsqrt(var + LN_EPS) * w + b

    h1 = ln(x + a, params["ln1_weight"], params["ln1_bias"])
    f = jnp.einsum("bse,fe->bsf", h1, params["ff1_weight"]) + params["ff1_bias"]
    f = jnp.maximum(f, 0.0)
    f = jnp.einsum("bsf,ef->bse", f, params["ff2_weight"]) + params["ff2_bias"]
    return ln(h1 + f, params["ln2_weight"], params["ln2_bias"])


def init_params(key, embed_dim):
    E = embed_dim
    ks = jax.random.split(key, 8)
    std = 0.1
    return {
        "in_proj_weight": jax.random.normal(ks[0], (3 * E, E), jnp.float32) * std,
        "in_proj_bias":   jax.random.normal(ks[1], (3 * E,),  jnp.float32) * std,
        "out_proj_weight": jax.random.normal(ks[2], (E, E),   jnp.float32) * std,
        "out_proj_bias":  jax.random.normal(ks[3], (E,),      jnp.float32) * std,
        "ln1_weight": jnp.ones((E,), jnp.float32),
        "ln1_bias":   jnp.zeros((E,), jnp.float32),
        "ff1_weight": jax.random.normal(ks[4], (4 * E, E), jnp.float32) * std,
        "ff1_bias":   jax.random.normal(ks[5], (4 * E,),  jnp.float32) * std,
        "ff2_weight": jax.random.normal(ks[6], (E, 4 * E), jnp.float32) * std,
        "ff2_bias":   jax.random.normal(ks[7], (E,),       jnp.float32) * std,
        "ln2_weight": jnp.ones((E,), jnp.float32),
        "ln2_bias":   jnp.zeros((E,), jnp.float32),
    }


if __name__ == "__main__":
    B, S, E, H = 2, 16, 32, 4
    key = jax.random.PRNGKey(0)
    kx, kp = jax.random.split(key)
    x = jax.random.normal(kx, (B, S, E), jnp.float32)
    params = init_params(kp, E)

    # q_tile=8 -> 2 query tiles per batch element, exercising the K/V scratch carry.
    out = attention_block(x, params, num_heads=H, q_tile=8)
    out = jax.block_until_ready(out)

    ref = attention_block_ref(x, params, num_heads=H)
    assert out.shape == (B, S, E)
    err = float(jnp.max(jnp.abs(out - ref)))
    # bf16 matmul operands (f32 accumulation) vs. the pure-f32 reference -> loose tolerance.
    assert jnp.allclose(out, ref, atol=5e-2, rtol=5e-2), \
        f"mismatch vs reference (max |err| = {err:.4g})"
    print("KERNEL_OK")
</pallas_src>

<mosaic_0001>
module attributes {stable_mosaic.version = 11 : i64} {
  func.func @_attention_block_kernel(%arg0: i32, %arg1: i32, %arg2: memref<1x8x32xf32, #tpu.memory_space<vmem>>, %arg3: memref<1x16x32xbf16, #tpu.memory_space<vmem>>, %arg4: memref<32x32xbf16, #tpu.memory_space<vmem>>, %arg5: memref<32x32xbf16, #tpu.memory_space<vmem>>, %arg6: memref<32x32xbf16, #tpu.memory_space<vmem>>, %arg7: memref<1x32xf32, #tpu.memory_space<vmem>>, %arg8: memref<1x32xf32, #tpu.memory_space<vmem>>, %arg9: memref<1x32xf32, #tpu.memory_space<vmem>>, %arg10: memref<32x32xbf16, #tpu.memory_space<vmem>>, %arg11: memref<1x32xf32, #tpu.memory_space<vmem>>, %arg12: memref<1x32xf32, #tpu.memory_space<vmem>>, %arg13: memref<1x32xf32, #tpu.memory_space<vmem>>, %arg14: memref<32x128xbf16, #tpu.memory_space<vmem>>, %arg15: memref<1x128xf32, #tpu.memory_space<vmem>>, %arg16: memref<128x32xbf16, #tpu.memory_space<vmem>>, %arg17: memref<1x32xf32, #tpu.memory_space<vmem>>, %arg18: memref<1x32xf32, #tpu.memory_space<vmem>>, %arg19: memref<1x32xf32, #tpu.memory_space<vmem>>, %arg20: memref<1x8x32xf32, #tpu.memory_space<vmem>>, %arg21: memref<4x16x8xbf16, #tpu.memory_space<vmem>>, %arg22: memref<4x16x8xbf16, #tpu.memory_space<vmem>>, %arg23: memref<4x8x8xbf16, #tpu.memory_space<vmem>>, %arg24: memref<8x32xbf16, #tpu.memory_space<vmem>>) attributes {dimension_semantics = [#tpu.dimension_semantics<parallel>, #tpu.dimension_semantics<arbitrary>], iteration_bounds = array<i64: 2, 2>, scalar_prefetch = 0 : i64, scratch_operands = 4 : i64, tpu.core_type = #tpu.core_type<tc>, window_params = [{transform_indices = @transform_0, window_bounds = array<i64: 1, 8, 32>}, {pipeline_mode = #tpu.pipeline_mode<synchronous>, transform_indices = @transform_1, window_bounds = array<i64: 1, 16, 32>}, {pipeline_mode = #tpu.pipeline_mode<synchronous>, transform_indices = @transform_2, window_bounds = array<i64: 32, 32>}, {pipeline_mode = #tpu.pipeline_mode<synchronous>, transform_indices = @transform_3, window_bounds = array<i64: 32, 32>}, {pipeline_mode = #tpu.pipeline_mode<synchronous>, transform_indices = @transform_4, window_bounds = array<i64: 32, 32>}, {pipeline_mode = #tpu.pipeline_mode<synchronous>, transform_indices = @transform_5, window_bounds = array<i64: 1, 32>}, {pipeline_mode = #tpu.pipeline_mode<synchronous>, transform_indices = @transform_6, window_bounds = array<i64: 1, 32>}, {pipeline_mode = #tpu.pipeline_mode<synchronous>, transform_indices = @transform_7, window_bounds = array<i64: 1, 32>}, {pipeline_mode = #tpu.pipeline_mode<synchronous>, transform_indices = @transform_8, window_bounds = array<i64: 32, 32>}, {pipeline_mode = #tpu.pipeline_mode<synchronous>, transform_indices = @transform_9, window_bounds = array<i64: 1, 32>}, {pipeline_mode = #tpu.pipeline_mode<synchronous>, transform_indices = @transform_10, window_bounds = array<i64: 1, 32>}, {pipeline_mode = #tpu.pipeline_mode<synchronous>, transform_indices = @transform_11, window_bounds = array<i64: 1, 32>}, {pipeline_mode = #tpu.pipeline_mode<synchronous>, transform_indices = @transform_12, window_bounds = array<i64: 32, 128>}, {pipeline_mode = #tpu.pipeline_mode<synchronous>, transform_indices = @transform_13, window_bounds = array<i64: 1, 128>}, {pipeline_mode = #tpu.pipeline_mode<synchronous>, transform_indices = @transform_14, window_bounds = array<i64: 128, 32>}, {pipeline_mode = #tpu.pipeline_mode<synchronous>, transform_indices = @transform_15, window_bounds = array<i64: 1, 32>}, {pipeline_mode = #tpu.pipeline_mode<synchronous>, transform_indices = @transform_16, window_bounds = array<i64: 1, 32>}, {pipeline_mode = #tpu.pipeline_mode<synchronous>, transform_indices = @transform_17, window_bounds = array<i64: 1, 32>}, {transform_indices = @transform_18, window_bounds = array<i64: 1, 8, 32>}]} {
    %c0_i32 = arith.constant 0 : i32
    %0 = arith.cmpi eq, %arg1, %c0_i32 : i32
    %1 = arith.extui %0 : i1 to i32
    %c0_i32_0 = arith.constant 0 : i32
    %2 = arith.cmpi ne, %1, %c0_i32_0 : i32
    scf.if %2 {
      %c0_i32_74 = arith.constant 0 : i32
      %c16_i32 = arith.constant 16 : i32
      %138 = arith.muli %c0_i32_74, %c16_i32 : i32
      %139 = tpu.assume_multiple %138, 16 : i32
      %c0_75 = arith.constant 0 : index
      %140 = arith.index_cast %139 : i32 to index
      %c0_76 = arith.constant 0 : index
      %141 = vector.load %arg3[%c0_75, %140, %c0_76] : memref<1x16x32xbf16, #tpu.memory_space<vmem>>, vector<1x16x32xbf16>
      %142 = vector.shape_cast %141 : vector<1x16x32xbf16> to vector<16x32xbf16>
      %c0_77 = arith.constant 0 : index
      %c0_78 = arith.constant 0 : index
      %143 = vector.load %arg5[%c0_77, %c0_78] : memref<32x32xbf16, #tpu.memory_space<vmem>>, vector<32x32xbf16>
      %cst_79 = arith.constant dense<0.000000e+00> : vector<16x32xf32>
      %144 = tpu.matmul %142, %143, %cst_79 {dimension_numbers = #tpu.dot_dimension_numbers<[1], [0], [0], [1], [0, 0, 1, 1], [], []>} : vector<16x32xbf16>, vector<32x32xbf16>, vector<16x32xf32> -> vector<16x32xf32>
      %c0_80 = arith.constant 0 : index
      %c0_81 = arith.constant 0 : index
      %145 = vector.load %arg8[%c0_80, %c0_81] : memref<1x32xf32, #tpu.memory_space<vmem>>, vector<1x32xf32>
      %146 = vector.broadcast %145 : vector<1x32xf32> to vector<16x32xf32>
      %147 = arith.addf %144, %146 : vector<16x32xf32>
      %c0_82 = arith.constant 0 : index
      %c0_83 = arith.constant 0 : index
      %148 = vector.load %arg6[%c0_82, %c0_83] : memref<32x32xbf16, #tpu.memory_space<vmem>>, vector<32x32xbf16>
      %cst_84 = arith.constant dense<0.000000e+00> : vector<16x32xf32>
      %149 = tpu.matmul %142, %148, %cst_84 {dimension_numbers = #tpu.dot_dimension_numbers<[1], [0], [0], [1], [0, 0, 1, 1], [], []>} : vector<16x32xbf16>, vector<32x32xbf16>, vector<16x32xf32> -> vector<16x32xf32>
      %c0_85 = arith.constant 0 : index
      %c0_86 = arith.constant 0 : index
      %150 = vector.load %arg9[%c0_85, %c0_86] : memref<1x32xf32, #tpu.memory_space<vmem>>, vector<1x32xf32>
      %151 = vector.broadcast %150 : vector<1x32xf32> to vector<16x32xf32>
      %152 = arith.addf %149, %151 : vector<16x32xf32>
      %153 = vector.extract_strided_slice %147 {offsets = [0, 0], sizes = [16, 8], strides = [1, 1]} : vector<16x32xf32> to vector<16x8xf32>
      %154 = arith.truncf %153 : vector<16x8xf32> to vector<16x8xbf16>
      %c0_87 = arith.constant 0 : index
      %155 = arith.index_cast %139 : i32 to index
      %c0_88 = arith.constant 0 : index
      %156 = vector.load %arg21[%c0_87, %155, %c0_88] : memref<4x16x8xbf16, #tpu.memory_space<vmem>>, vector<1x16x8xbf16>
      %157 = vector.shape_cast %156 : vector<1x16x8xbf16> to vector<16x8xbf16>
      %158 = vector.shape_cast %154 : vector<16x8xbf16> to vector<1x16x8xbf16>
      tpu.vector_store %arg21[%c0_87, %155, %c0_88], %158 {strides = array<i32>} : memref<4x16x8xbf16, #tpu.memory_space<vmem>>, vector<1x16x8xbf16>,
      %159 = vector.extract_strided_slice %152 {offsets = [0, 0], sizes = [16, 8], strides = [1, 1]} : vector<16x32xf32> to vector<16x8xf32>
      %160 = arith.truncf %159 : vector<16x8xf32> to vector<16x8xbf16>
      %c0_89 = arith.constant 0 : index
      %161 = arith.index_cast %139 : i32 to index
      %c0_90 = arith.constant 0 : index
      %162 = vector.load %arg22[%c0_89, %161, %c0_90] : memref<4x16x8xbf16, #tpu.memory_space<vmem>>, vector<1x16x8xbf16>
      %163 = vector.shape_cast %162 : vector<1x16x8xbf16> to vector<16x8xbf16>
      %164 = vector.shape_cast %160 : vector<16x8xbf16> to vector<1x16x8xbf16>
      tpu.vector_store %arg22[%c0_89, %161, %c0_90], %164 {strides = array<i32>} : memref<4x16x8xbf16, #tpu.memory_space<vmem>>, vector<1x16x8xbf16>,
      %165 = vector.extract_strided_slice %147 {offsets = [0, 8], sizes = [16, 8], strides = [1, 1]} : vector<16x32xf32> to vector<16x8xf32>
      %166 = arith.truncf %165 : vector<16x8xf32> to vector<16x8xbf16>
      %c1_91 = arith.constant 1 : index
      %167 = arith.index_cast %139 : i32 to index
      %c0_92 = arith.constant 0 : index
      %168 = vector.load %arg21[%c1_91, %167, %c0_92] : memref<4x16x8xbf16, #tpu.memory_space<vmem>>, vector<1x16x8xbf16>
      %169 = vector.shape_cast %168 : vector<1x16x8xbf16> to vector<16x8xbf16>
      %170 = vector.shape_cast %166 : vector<16x8xbf16> to vector<1x16x8xbf16>
      tpu.vector_store %arg21[%c1_91, %167, %c0_92], %170 {strides = array<i32>} : memref<4x16x8xbf16, #tpu.memory_space<vmem>>, vector<1x16x8xbf16>,
      %171 = vector.extract_strided_slice %152 {offsets = [0, 8], sizes = [16, 8], strides = [1, 1]} : vector<16x32xf32> to vector<16x8xf32>
      %172 = arith.truncf %171 : vector<16x8xf32> to vector<16x8xbf16>
      %c1_93 = arith.constant 1 : index
      %173 = arith.index_cast %139 : i32 to index
      %c0_94 = arith.constant 0 : index
      %174 = vector.load %arg22[%c1_93, %173, %c0_94] : memref<4x16x8xbf16, #tpu.memory_space<vmem>>, vector<1x16x8xbf16>
      %175 = vector.shape_cast %174 : vector<1x16x8xbf16> to vector<16x8xbf16>
      %176 = vector.shape_cast %172 : vector<16x8xbf16> to vector<1x16x8xbf16>
      tpu.vector_store %arg22[%c1_93, %173, %c0_94], %176 {strides = array<i32>} : memref<4x16x8xbf16, #tpu.memory_space<vmem>>, vector<1x16x8xbf16>,
      %177 = vector.extract_strided_slice %147 {offsets = [0, 16], sizes = [16, 8], strides = [1, 1]} : vector<16x32xf32> to vector<16x8xf32>
      %178 = arith.truncf %177 : vector<16x8xf32> to vector<16x8xbf16>
      %c2_95 = arith.constant 2 : index
      %179 = arith.index_cast %139 : i32 to index
      %c0_96 = arith.constant 0 : index
      %180 = vector.load %arg21[%c2_95, %179, %c0_96] : memref<4x16x8xbf16, #tpu.memory_space<vmem>>, vector<1x16x8xbf16>
      %181 = vector.shape_cast %180 : vector<1x16x8xbf16> to vector<16x8xbf16>
      %182 = vector.shape_cast %178 : vector<16x8xbf16> to vector<1x16x8xbf16>
      tpu.vector_store %arg21[%c2_95, %179, %c0_96], %182 {strides = array<i32>} : memref<4x16x8xbf16, #tpu.memory_space<vmem>>, vector<1x16x8xbf16>,
      %183 = vector.extract_strided_slice %152 {offsets = [0, 16], sizes = [16, 8], strides = [1, 1]} : vector<16x32xf32> to vector<16x8xf32>
      %184 = arith.truncf %183 : vector<16x8xf32> to vector<16x8xbf16>
      %c2_97 = arith.constant 2 : index
      %185 = arith.index_cast %139 : i32 to index
      %c0_98 = arith.constant 0 : index
      %186 = vector.load %arg22[%c2_97, %185, %c0_98] : memref<4x16x8xbf16, #tpu.memory_space<vmem>>, vector<1x16x8xbf16>
      %187 = vector.shape_cast %186 : vector<1x16x8xbf16> to vector<16x8xbf16>
      %188 = vector.shape_cast %184 : vector<16x8xbf16> to vector<1x16x8xbf16>
      tpu.vector_store %arg22[%c2_97, %185, %c0_98], %188 {strides = array<i32>} : memref<4x16x8xbf16, #tpu.memory_space<vmem>>, vector<1x16x8xbf16>,
      %189 = vector.extract_strided_slice %147 {offsets = [0, 24], sizes = [16, 8], strides = [1, 1]} : vector<16x32xf32> to vector<16x8xf32>
      %190 = arith.truncf %189 : vector<16x8xf32> to vector<16x8xbf16>
      %c3_99 = arith.constant 3 : index
      %191 = arith.index_cast %139 : i32 to index
      %c0_100 = arith.constant 0 : index
      %192 = vector.load %arg21[%c3_99, %191, %c0_100] : memref<4x16x8xbf16, #tpu.memory_space<vmem>>, vector<1x16x8xbf16>
      %193 = vector.shape_cast %192 : vector<1x16x8xbf16> to vector<16x8xbf16>
      %194 = vector.shape_cast %190 : vector<16x8xbf16> to vector<1x16x8xbf16>
      tpu.vector_store %arg21[%c3_99, %191, %c0_100], %194 {strides = array<i32>} : memref<4x16x8xbf16, #tpu.memory_space<vmem>>, vector<1x16x8xbf16>,
      %195 = vector.extract_strided_slice %152 {offsets = [0, 24], sizes = [16, 8], strides = [1, 1]} : vector<16x32xf32> to vector<16x8xf32>
      %196 = arith.truncf %195 : vector<16x8xf32> to vector<16x8xbf16>
      %c3_101 = arith.constant 3 : index
      %197 = arith.index_cast %139 : i32 to index
      %c0_102 = arith.constant 0 : index
      %198 = vector.load %arg22[%c3_101, %197, %c0_102] : memref<4x16x8xbf16, #tpu.memory_space<vmem>>, vector<1x16x8xbf16>
      %199 = vector.shape_cast %198 : vector<1x16x8xbf16> to vector<16x8xbf16>
      %200 = vector.shape_cast %196 : vector<16x8xbf16> to vector<1x16x8xbf16>
      tpu.vector_store %arg22[%c3_101, %197, %c0_102], %200 {strides = array<i32>} : memref<4x16x8xbf16, #tpu.memory_space<vmem>>, vector<1x16x8xbf16>,
      %c1_i32 = arith.constant 1 : i32
    } else {
    }
    %c0 = arith.constant 0 : index
    %c0_1 = arith.constant 0 : index
    %c0_2 = arith.constant 0 : index
    %3 = vector.load %arg2[%c0, %c0_1, %c0_2] : memref<1x8x32xf32, #tpu.memory_space<vmem>>, vector<1x8x32xf32>
    %4 = vector.shape_cast %3 : vector<1x8x32xf32> to vector<8x32xf32>
    %5 = arith.truncf %4 : vector<8x32xf32> to vector<8x32xbf16>
    %c0_3 = arith.constant 0 : index
    %c0_4 = arith.constant 0 : index
    %6 = vector.load %arg4[%c0_3, %c0_4] : memref<32x32xbf16, #tpu.memory_space<vmem>>, vector<32x32xbf16>
    %cst = arith.constant dense<0.000000e+00> : vector<8x32xf32>
    %7 = tpu.matmul %5, %6, %cst {dimension_numbers = #tpu.dot_dimension_numbers<[1], [0], [0], [1], [0, 0, 1, 1], [], []>} : vector<8x32xbf16>, vector<32x32xbf16>, vector<8x32xf32> -> vector<8x32xf32>
    %c0_5 = arith.constant 0 : index
    %c0_6 = arith.constant 0 : index
    %8 = vector.load %arg7[%c0_5, %c0_6] : memref<1x32xf32, #tpu.memory_space<vmem>>, vector<1x32xf32>
    %9 = vector.broadcast %8 : vector<1x32xf32> to vector<8x32xf32>
    %10 = arith.addf %7, %9 : vector<8x32xf32>
    %cst_7 = arith.constant 0.353553385 : f32
    %11 = vector.broadcast %cst_7 : f32 to vector<8x32xf32>
    %12 = arith.mulf %10, %11 : vector<8x32xf32>
    %13 = vector.extract_strided_slice %12 {offsets = [0, 0], sizes = [8, 8], strides = [1, 1]} : vector<8x32xf32> to vector<8x8xf32>
    %14 = arith.truncf %13 : vector<8x8xf32> to vector<8x8xbf16>
    %c0_8 = arith.constant 0 : index
    %c0_9 = arith.constant 0 : index
    %c0_10 = arith.constant 0 : index
    %15 = vector.load %arg23[%c0_8, %c0_9, %c0_10] : memref<4x8x8xbf16, #tpu.memory_space<vmem>>, vector<1x8x8xbf16>
    %16 = vector.shape_cast %15 : vector<1x8x8xbf16> to vector<8x8xbf16>
    %17 = vector.shape_cast %14 : vector<8x8xbf16> to vector<1x8x8xbf16>
    tpu.vector_store %arg23[%c0_8, %c0_9, %c0_10], %17 {strides = array<i32>} : memref<4x8x8xbf16, #tpu.memory_space<vmem>>, vector<1x8x8xbf16>,
    %18 = vector.extract_strided_slice %12 {offsets = [0, 8], sizes = [8, 8], strides = [1, 1]} : vector<8x32xf32> to vector<8x8xf32>
    %19 = arith.truncf %18 : vector<8x8xf32> to vector<8x8xbf16>
    %c1 = arith.constant 1 : index
    %c0_11 = arith.constant 0 : index
    %c0_12 = arith.constant 0 : index
    %20 = vector.load %arg23[%c1, %c0_11, %c0_12] : memref<4x8x8xbf16, #tpu.memory_space<vmem>>, vector<1x8x8xbf16>
    %21 = vector.shape_cast %20 : vector<1x8x8xbf16> to vector<8x8xbf16>
    %22 = vector.shape_cast %19 : vector<8x8xbf16> to vector<1x8x8xbf16>
    tpu.vector_store %arg23[%c1, %c0_11, %c0_12], %22 {strides = array<i32>} : memref<4x8x8xbf16, #tpu.memory_space<vmem>>, vector<1x8x8xbf16>,
    %23 = vector.extract_strided_slice %12 {offsets = [0, 16], sizes = [8, 8], strides = [1, 1]} : vector<8x32xf32> to vector<8x8xf32>
    %24 = arith.truncf %23 : vector<8x8xf32> to vector<8x8xbf16>
    %c2 = arith.constant 2 : index
    %c0_13 = arith.constant 0 : index
    %c0_14 = arith.constant 0 : index
    %25 = vector.load %arg23[%c2, %c0_13, %c0_14] : memref<4x8x8xbf16, #tpu.memory_space<vmem>>, vector<1x8x8xbf16>
    %26 = vector.shape_cast %25 : vector<1x8x8xbf16> to vector<8x8xbf16>
    %27 = vector.shape_cast %24 : vector<8x8xbf16> to vector<1x8x8xbf16>
    tpu.vector_store %arg23[%c2, %c0_13, %c0_14], %27 {strides = array<i32>} : memref<4x8x8xbf16, #tpu.memory_space<vmem>>, vector<1x8x8xbf16>,
    %28 = vector.extract_strided_slice %12 {offsets = [0, 24], sizes = [8, 8], strides = [1, 1]} : vector<8x32xf32> to vector<8x8xf32>
    %29 = arith.truncf %28 : vector<8x8xf32> to vector<8x8xbf16>
    %c3 = arith.constant 3 : index
    %c0_15 = arith.constant 0 : index
    %c0_16 = arith.constant 0 : index
    %30 = vector.load %arg23[%c3, %c0_15, %c0_16] : memref<4x8x8xbf16, #tpu.memory_space<vmem>>, vector<1x8x8xbf16>
    %31 = vector.shape_cast %30 : vector<1x8x8xbf16> to vector<8x8xbf16>
    %32 = vector.shape_cast %29 : vector<8x8xbf16> to vector<1x8x8xbf16>
    tpu.vector_store %arg23[%c3, %c0_15, %c0_16], %32 {strides = array<i32>} : memref<4x8x8xbf16, #tpu.memory_space<vmem>>, vector<1x8x8xbf16>,
    %c0_17 = arith.constant 0 : index
    %c0_18 = arith.constant 0 : index
    %c0_19 = arith.constant 0 : index
    %33 = vector.load %arg23[%c0_17, %c0_18, %c0_19] : memref<4x8x8xbf16, #tpu.memory_space<vmem>>, vector<4x8x8xbf16>
    %c0_20 = arith.constant 0 : index
    %c0_21 = arith.constant 0 : index
    %c0_22 = arith.constant 0 : index
    %34 = vector.load %arg21[%c0_20, %c0_21, %c0_22] : memref<4x16x8xbf16, #tpu.memory_space<vmem>>, vector<4x16x8xbf16>
    "tpu.trace_start"() <{level = 10 : i32, message = "hqd,hkd->hqk"}> : () -> ()
    %cst_23 = arith.constant dense<0.000000e+00> : vector<4x8x16xf32>
    %35 = tpu.matmul %33, %34, %cst_23 {dimension_numbers = #tpu.dot_dimension_numbers<[2], [2], [1], [1], [0, 0, 0, 1, 1, 1], [0], [0]>} : vector<4x8x8xbf16>, vector<4x16x8xbf16>, vector<4x8x16xf32> -> vector<4x8x16xf32>
    "tpu.trace_stop"() : () -> ()
    %cst_24 = arith.constant dense<0xFF800000> : vector<4x8xf32>
    %36 = vector.multi_reduction <maximumf>, %35, %cst_24 [2] : vector<4x8x16xf32> to vector<4x8xf32>
    %37 = vector.shape_cast %36 : vector<4x8xf32> to vector<4x8x1xf32>
    %38 = vector.broadcast %37 : vector<4x8x1xf32> to vector<4x8x16xf32>
    %39 = arith.subf %35, %38 : vector<4x8x16xf32>
    %40 = math.exp %39 : vector<4x8x16xf32>
    %cst_25 = arith.constant dense<0.000000e+00> : vector<4x8xf32>
    %41 = vector.multi_reduction <add>, %40, %cst_25 [2] : vector<4x8x16xf32> to vector<4x8xf32>
    %42 = vector.shape_cast %41 : vector<4x8xf32> to vector<4x8x1xf32>
    %43 = tpu.reciprocal %42 {approx = true} : vector<4x8x1xf32> -> vector<4x8x1xf32>
    %44 = vector.broadcast %43 : vector<4x8x1xf32> to vector<4x8x16xf32>
    %45 = arith.mulf %40, %44 : vector<4x8x16xf32>
    %46 = arith.truncf %45 : vector<4x8x16xf32> to vector<4x8x16xbf16>
    %c0_26 = arith.constant 0 : index
    %c0_27 = arith.constant 0 : index
    %c0_28 = arith.constant 0 : index
    %47 = vector.load %arg22[%c0_26, %c0_27, %c0_28] : memref<4x16x8xbf16, #tpu.memory_space<vmem>>, vector<4x16x8xbf16>
    "tpu.trace_start"() <{level = 10 : i32, message = "hqk,hkd->hqd"}> : () -> ()
    %cst_29 = arith.constant dense<0.000000e+00> : vector<4x8x8xf32>
    %48 = tpu.matmul %46, %47, %cst_29 {dimension_numbers = #tpu.dot_dimension_numbers<[2], [1], [1], [2], [0, 0, 0, 1, 1, 2], [0], [0]>} : vector<4x8x16xbf16>, vector<4x16x8xbf16>, vector<4x8x8xf32> -> vector<4x8x8xf32>
    "tpu.trace_stop"() : () -> ()
    %49 = vector.extract_strided_slice %48 {offsets = [0, 0, 0], sizes = [1, 8, 8], strides = [1, 1, 1]} : vector<4x8x8xf32> to vector<1x8x8xf32>
    %50 = vector.shape_cast %49 : vector<1x8x8xf32> to vector<8x8xf32>
    %51 = arith.truncf %50 : vector<8x8xf32> to vector<8x8xbf16>
    %c0_30 = arith.constant 0 : index
    %c0_31 = arith.constant 0 : index
    %52 = vector.load %arg24[%c0_30, %c0_31] : memref<8x32xbf16, #tpu.memory_space<vmem>>, vector<8x8xbf16>
    tpu.vector_store %arg24[%c0_30, %c0_31], %51 {strides = array<i32>} : memref<8x32xbf16, #tpu.memory_space<vmem>>, vector<8x8xbf16>,
    %53 = vector.extract_strided_slice %48 {offsets = [1, 0, 0], sizes = [1, 8, 8], strides = [1, 1, 1]} : vector<4x8x8xf32> to vector<1x8x8xf32>
    %54 = vector.shape_cast %53 : vector<1x8x8xf32> to vector<8x8xf32>
    %55 = arith.truncf %54 : vector<8x8xf32> to vector<8x8xbf16>
    %c0_32 = arith.constant 0 : index
    %c8 = arith.constant 8 : index
    %56 = vector.load %arg24[%c0_32, %c8] : memref<8x32xbf16, #tpu.memory_space<vmem>>, vector<8x8xbf16>
    tpu.vector_store %arg24[%c0_32, %c8], %55 {strides = array<i32>} : memref<8x32xbf16, #tpu.memory_space<vmem>>, vector<8x8xbf16>,
    %57 = vector.extract_strided_slice %48 {offsets = [2, 0, 0], sizes = [1, 8, 8], strides = [1, 1, 1]} : vector<4x8x8xf32> to vector<1x8x8xf32>
    %58 = vector.shape_cast %57 : vector<1x8x8xf32> to vector<8x8xf32>
    %59 = arith.truncf %58 : vector<8x8xf32> to vector<8x8xbf16>
    %c0_33 = arith.constant 0 : index
    %c16 = arith.constant 16 : index
    %60 = vector.load %arg24[%c0_33, %c16] : memref<8x32xbf16, #tpu.memory_space<vmem>>, vector<8x8xbf16>
    tpu.vector_store %arg24[%c0_33, %c16], %59 {strides = array<i32>} : memref<8x32xbf16, #tpu.memory_space<vmem>>, vector<8x8xbf16>,
    %61 = vector.extract_strided_slice %48 {offsets = [3, 0, 0], sizes = [1, 8, 8], strides = [1, 1, 1]} : vector<4x8x8xf32> to vector<1x8x8xf32>
    %62 = vector.shape_cast %61 : vector<1x8x8xf32> to vector<8x8xf32>
    %63 = arith.truncf %62 : vector<8x8xf32> to vector<8x8xbf16>
    %c0_34 = arith.constant 0 : index
    %c24 = arith.constant 24 : index
    %64 = vector.load %arg24[%c0_34, %c24] : memref<8x32xbf16, #tpu.memory_space<vmem>>, vector<8x8xbf16>
    tpu.vector_store %arg24[%c0_34, %c24], %63 {strides = array<i32>} : memref<8x32xbf16, #tpu.memory_space<vmem>>, vector<8x8xbf16>,
    %c0_35 = arith.constant 0 : index
    %c0_36 = arith.constant 0 : index
    %65 = vector.load %arg24[%c0_35, %c0_36] : memref<8x32xbf16, #tpu.memory_space<vmem>>, vector<8x32xbf16>
    %c0_37 = arith.constant 0 : index
    %c0_38 = arith.constant 0 : index
    %66 = vector.load %arg10[%c0_37, %c0_38] : memref<32x32xbf16, #tpu.memory_space<vmem>>, vector<32x32xbf16>
    %cst_39 = arith.constant dense<0.000000e+00> : vector<8x32xf32>
    %67 = tpu.matmul %65, %66, %cst_39 {dimension_numbers = #tpu.dot_dimension_numbers<[1], [0], [0], [1], [0, 0, 1, 1], [], []>} : vector<8x32xbf16>, vector<32x32xbf16>, vector<8x32xf32> -> vector<8x32xf32>
    %c0_40 = arith.constant 0 : index
    %c0_41 = arith.constant 0 : index
    %68 = vector.load %arg11[%c0_40, %c0_41] : memref<1x32xf32, #tpu.memory_space<vmem>>, vector<1x32xf32>
    %69 = vector.broadcast %68 : vector<1x32xf32> to vector<8x32xf32>
    %70 = arith.addf %67, %69 : vector<8x32xf32>
    %71 = arith.addf %4, %70 : vector<8x32xf32>
    %c0_42 = arith.constant 0 : index
    %c0_43 = arith.constant 0 : index
    %72 = vector.load %arg12[%c0_42, %c0_43] : memref<1x32xf32, #tpu.memory_space<vmem>>, vector<1x32xf32>
    %c0_44 = arith.constant 0 : index
    %c0_45 = arith.constant 0 : index
    %73 = vector.load %arg13[%c0_44, %c0_45] : memref<1x32xf32, #tpu.memory_space<vmem>>, vector<1x32xf32>
    %cst_46 = arith.constant dense<0.000000e+00> : vector<8xf32>
    %74 = vector.multi_reduction <add>, %71, %cst_46 [1] : vector<8x32xf32> to vector<8xf32>
    %75 = vector.shape_cast %74 : vector<8xf32> to vector<8x1xf32>
    %cst_47 = arith.constant 3.200000e+01 : f32
    %76 = vector.broadcast %cst_47 : f32 to vector<8x1xf32>
    %77 = arith.divf %75, %76 : vector<8x1xf32>
    %78 = vector.broadcast %77 : vector<8x1xf32> to vector<8x32xf32>
    %79 = arith.subf %71, %78 : vector<8x32xf32>
    %80 = arith.mulf %79, %79 : vector<8x32xf32>
    %cst_48 = arith.constant dense<0.000000e+00> : vector<8xf32>
    %81 = vector.multi_reduction <add>, %80, %cst_48 [1] : vector<8x32xf32> to vector<8xf32>
    %82 = vector.shape_cast %81 : vector<8xf32> to vector<8x1xf32>
    %cst_49 = arith.constant 3.200000e+01 : f32
    %83 = vector.broadcast %cst_49 : f32 to vector<8x1xf32>
    %84 = arith.divf %82, %83 : vector<8x1xf32>
    %85 = vector.broadcast %77 : vector<8x1xf32> to vector<8x32xf32>
    %86 = arith.subf %71, %85 : vector<8x32xf32>
    %cst_50 = arith.constant 9.99999974E-6 : f32
    %87 = vector.broadcast %cst_50 : f32 to vector<8x1xf32>
    %88 = arith.addf %84, %87 : vector<8x1xf32>
    %89 = math.rsqrt %88 : vector<8x1xf32>
    %90 = vector.broadcast %89 : vector<8x1xf32> to vector<8x32xf32>
    %91 = arith.mulf %86, %90 : vector<8x32xf32>
    %92 = vector.broadcast %72 : vector<1x32xf32> to vector<8x32xf32>
    %93 = arith.mulf %91, %92 : vector<8x32xf32>
    %94 = vector.broadcast %73 : vector<1x32xf32> to vector<8x32xf32>
    %95 = arith.addf %93, %94 : vector<8x32xf32>
    %96 = arith.truncf %95 : vector<8x32xf32> to vector<8x32xbf16>
    %c0_51 = arith.constant 0 : index
    %c0_52 = arith.constant 0 : index
    %97 = vector.load %arg14[%c0_51, %c0_52] : memref<32x128xbf16, #tpu.memory_space<vmem>>, vector<32x128xbf16>
    %cst_53 = arith.constant dense<0.000000e+00> : vector<8x128xf32>
    %98 = tpu.matmul %96, %97, %cst_53 {dimension_numbers = #tpu.dot_dimension_numbers<[1], [0], [0], [1], [0, 0, 1, 1], [], []>} : vector<8x32xbf16>, vector<32x128xbf16>, vector<8x128xf32> -> vector<8x128xf32>
    %c0_54 = arith.constant 0 : index
    %c0_55 = arith.constant 0 : index
    %99 = vector.load %arg15[%c0_54, %c0_55] : memref<1x128xf32, #tpu.memory_space<vmem>>, vector<1x128xf32>
    %100 = vector.broadcast %99 : vector<1x128xf32> to vector<8x128xf32>
    %101 = arith.addf %98, %100 : vector<8x128xf32>
    %cst_56 = arith.constant 0.000000e+00 : f32
    %102 = vector.broadcast %cst_56 : f32 to vector<8x128xf32>
    %103 = arith.maximumf %101, %102 : vector<8x128xf32>
    %104 = arith.truncf %103 : vector<8x128xf32> to vector<8x128xbf16>
    %c0_57 = arith.constant 0 : index
    %c0_58 = arith.constant 0 : index
    %105 = vector.load %arg16[%c0_57, %c0_58] : memref<128x32xbf16, #tpu.memory_space<vmem>>, vector<128x32xbf16>
    %cst_59 = arith.constant dense<0.000000e+00> : vector<8x32xf32>
    %106 = tpu.matmul %104, %105, %cst_59 {dimension_numbers = #tpu.dot_dimension_numbers<[1], [0], [0], [1], [0, 0, 1, 1], [], []>} : vector<8x128xbf16>, vector<128x32xbf16>, vector<8x32xf32> -> vector<8x32xf32>
    %c0_60 = arith.constant 0 : index
    %c0_61 = arith.constant 0 : index
    %107 = vector.load %arg17[%c0_60, %c0_61] : memref<1x32xf32, #tpu.memory_space<vmem>>, vector<1x32xf32>
    %108 = vector.broadcast %107 : vector<1x32xf32> to vector<8x32xf32>
    %109 = arith.addf %106, %108 : vector<8x32xf32>
    %110 = arith.addf %95, %109 : vector<8x32xf32>
    %c0_62 = arith.constant 0 : index
    %c0_63 = arith.constant 0 : index
    %111 = vector.load %arg18[%c0_62, %c0_63] : memref<1x32xf32, #tpu.memory_space<vmem>>, vector<1x32xf32>
    %c0_64 = arith.constant 0 : index
    %c0_65 = arith.constant 0 : index
    %112 = vector.load %arg19[%c0_64, %c0_65] : memref<1x32xf32, #tpu.memory_space<vmem>>, vector<1x32xf32>
    %cst_66 = arith.constant dense<0.000000e+00> : vector<8xf32>
    %113 = vector.multi_reduction <add>, %110, %cst_66 [1] : vector<8x32xf32> to vector<8xf32>
    %114 = vector.shape_cast %113 : vector<8xf32> to vector<8x1xf32>
    %cst_67 = arith.constant 3.200000e+01 : f32
    %115 = vector.broadcast %cst_67 : f32 to vector<8x1xf32>
    %116 = arith.divf %114, %115 : vector<8x1xf32>
    %117 = vector.broadcast %116 : vector<8x1xf32> to vector<8x32xf32>
    %118 = arith.subf %110, %117 : vector<8x32xf32>
    %119 = arith.mulf %118, %118 : vector<8x32xf32>
    %cst_68 = arith.constant dense<0.000000e+00> : vector<8xf32>
    %120 = vector.multi_reduction <add>, %119, %cst_68 [1] : vector<8x32xf32> to vector<8xf32>
    %121 = vector.shape_cast %120 : vector<8xf32> to vector<8x1xf32>
    %cst_69 = arith.constant 3.200000e+01 : f32
    %122 = vector.broadcast %cst_69 : f32 to vector<8x1xf32>
    %123 = arith.divf %121, %122 : vector<8x1xf32>
    %124 = vector.broadcast %116 : vector<8x1xf32> to vector<8x32xf32>
    %125 = arith.subf %110, %124 : vector<8x32xf32>
    %cst_70 = arith.constant 9.99999974E-6 : f32
    %126 = vector.broadcast %cst_70 : f32 to vector<8x1xf32>
    %127 = arith.addf %123, %126 : vector<8x1xf32>
    %128 = math.rsqrt %127 : vector<8x1xf32>
    %129 = vector.broadcast %128 : vector<8x1xf32> to vector<8x32xf32>
    %130 = arith.mulf %125, %129 : vector<8x32xf32>
    %131 = vector.broadcast %111 : vector<1x32xf32> to vector<8x32xf32>
    %132 = arith.mulf %130, %131 : vector<8x32xf32>
    %133 = vector.broadcast %112 : vector<1x32xf32> to vector<8x32xf32>
    %134 = arith.addf %132, %133 : vector<8x32xf32>
    %c0_71 = arith.constant 0 : index
    %c0_72 = arith.constant 0 : index
    %c0_73 = arith.constant 0 : index
    %135 = vector.load %arg20[%c0_71, %c0_72, %c0_73] : memref<1x8x32xf32, #tpu.memory_space<vmem>>, vector<1x8x32xf32>
    %136 = vector.shape_cast %135 : vector<1x8x32xf32> to vector<8x32xf32>
    %137 = vector.shape_cast %134 : vector<8x32xf32> to vector<1x8x32xf32>
    tpu.vector_store %arg20[%c0_71, %c0_72, %c0_73], %137 {strides = array<i32>} : memref<1x8x32xf32, #tpu.memory_space<vmem>>, vector<1x8x32xf32>,
    return
  }
  func.func @transform_0(%arg0: i32, %arg1: i32) -> (i32, i32, i32) {
    %c0_i32 = arith.constant 0 : i32
    %c0_i32_0 = arith.constant 0 : i32
    return %arg0, %arg1, %c0_i32 : i32, i32, i32
  }
  func.func @transform_1(%arg0: i32, %arg1: i32) -> (i32, i32, i32) {
    %c0_i32 = arith.constant 0 : i32
    %c0_i32_0 = arith.constant 0 : i32
    %c0_i32_1 = arith.constant 0 : i32
    return %arg0, %c0_i32, %c0_i32_0 : i32, i32, i32
  }
  func.func @transform_2(%arg0: i32, %arg1: i32) -> (i32, i32) {
    %c0_i32 = arith.constant 0 : i32
    %c0_i32_0 = arith.constant 0 : i32
    %c0_i32_1 = arith.constant 0 : i32
    return %c0_i32, %c0_i32_0 : i32, i32
  }
  func.func @transform_3(%arg0: i32, %arg1: i32) -> (i32, i32) {
    %c0_i32 = arith.constant 0 : i32
    %c0_i32_0 = arith.constant 0 : i32
    %c0_i32_1 = arith.constant 0 : i32
    return %c0_i32, %c0_i32_0 : i32, i32
  }
  func.func @transform_4(%arg0: i32, %arg1: i32) -> (i32, i32) {
    %c0_i32 = arith.constant 0 : i32
    %c0_i32_0 = arith.constant 0 : i32
    %c0_i32_1 = arith.constant 0 : i32
    return %c0_i32, %c0_i32_0 : i32, i32
  }
  func.func @transform_5(%arg0: i32, %arg1: i32) -> (i32, i32) {
    %c0_i32 = arith.constant 0 : i32
    %c0_i32_0 = arith.constant 0 : i32
    %c0_i32_1 = arith.constant 0 : i32
    return %c0_i32, %c0_i32_0 : i32, i32
  }
  func.func @transform_6(%arg0: i32, %arg1: i32) -> (i32, i32) {
    %c0_i32 = arith.constant 0 : i32
    %c0_i32_0 = arith.constant 0 : i32
    %c0_i32_1 = arith.constant 0 : i32
    return %c0_i32, %c0_i32_0 : i32, i32
  }
  func.func @transform_7(%arg0: i32, %arg1: i32) -> (i32, i32) {
    %c0_i32 = arith.constant 0 : i32
    %c0_i32_0 = arith.constant 0 : i32
    %c0_i32_1 = arith.constant 0 : i32
    return %c0_i32, %c0_i32_0 : i32, i32
  }
  func.func @transform_8(%arg0: i32, %arg1: i32) -> (i32, i32) {
    %c0_i32 = arith.constant 0 : i32
    %c0_i32_0 = arith.constant 0 : i32
    %c0_i32_1 = arith.constant 0 : i32
    return %c0_i32, %c0_i32_0 : i32, i32
  }
  func.func @transform_9(%arg0: i32, %arg1: i32) -> (i32, i32) {
    %c0_i32 = arith.constant 0 : i32
    %c0_i32_0 = arith.constant 0 : i32
    %c0_i32_1 = arith.constant 0 : i32
    return %c0_i32, %c0_i32_0 : i32, i32
  }
  func.func @transform_10(%arg0: i32, %arg1: i32) -> (i32, i32) {
    %c0_i32 = arith.constant 0 : i32
    %c0_i32_0 = arith.constant 0 : i32
    %c0_i32_1 = arith.constant 0 : i32
    return %c0_i32, %c0_i32_0 : i32, i32
  }
  func.func @transform_11(%arg0: i32, %arg1: i32) -> (i32, i32) {
    %c0_i32 = arith.constant 0 : i32
    %c0_i32_0 = arith.constant 0 : i32
    %c0_i32_1 = arith.constant 0 : i32
    return %c0_i32, %c0_i32_0 : i32, i32
  }
  func.func @transform_12(%arg0: i32, %arg1: i32) -> (i32, i32) {
    %c0_i32 = arith.constant 0 : i32
    %c0_i32_0 = arith.constant 0 : i32
    %c0_i32_1 = arith.constant 0 : i32
    return %c0_i32, %c0_i32_0 : i32, i32
  }
  func.func @transform_13(%arg0: i32, %arg1: i32) -> (i32, i32) {
    %c0_i32 = arith.constant 0 : i32
    %c0_i32_0 = arith.constant 0 : i32
    %c0_i32_1 = arith.constant 0 : i32
    return %c0_i32, %c0_i32_0 : i32, i32
  }
  func.func @transform_14(%arg0: i32, %arg1: i32) -> (i32, i32) {
    %c0_i32 = arith.constant 0 : i32
    %c0_i32_0 = arith.constant 0 : i32
    %c0_i32_1 = arith.constant 0 : i32
    return %c0_i32, %c0_i32_0 : i32, i32
  }
  func.func @transform_15(%arg0: i32, %arg1: i32) -> (i32, i32) {
    %c0_i32 = arith.constant 0 : i32
    %c0_i32_0 = arith.constant 0 : i32
    %c0_i32_1 = arith.constant 0 : i32
    return %c0_i32, %c0_i32_0 : i32, i32
  }
  func.func @transform_16(%arg0: i32, %arg1: i32) -> (i32, i32) {
    %c0_i32 = arith.constant 0 : i32
    %c0_i32_0 = arith.constant 0 : i32
    %c0_i32_1 = arith.constant 0 : i32
    return %c0_i32, %c0_i32_0 : i32, i32
  }
  func.func @transform_17(%arg0: i32, %arg1: i32) -> (i32, i32) {
    %c0_i32 = arith.constant 0 : i32
    %c0_i32_0 = arith.constant 0 : i32
    %c0_i32_1 = arith.constant 0 : i32
    return %c0_i32, %c0_i32_0 : i32, i32
  }
  func.func @transform_18(%arg0: i32, %arg1: i32) -> (i32, i32, i32) {
    %c0_i32 = arith.constant 0 : i32
    %c0_i32_0 = arith.constant 0 : i32
    return %arg0, %arg1, %c0_i32 : i32, i32, i32
  }
}

</mosaic_0001>

<llo_original>
// kernel: tpu_custom_call.1
$region0: #{tpu_custom_call.1}
  #allocation0 [shape = 'u32[]', space=smem, size = 0x4, offset = 0x4, fixed_abs, tag = 'smem constant byte address 0x4 - core index']
  #allocation1 [shape = 'u32[144,128]{1,0:T(1,128)}', space=vmem, size = 0x12000, scoped, tag = 'internal scratch']
  #allocation2 [shape = 'bf16[4,16,8]{2,1,0:T(16,128)(2,1)}', space=vmem, size = 0x4000, scoped, tag = 'scratch operand']
  #allocation3 [shape = 'bf16[4,16,8]{2,1,0:T(16,128)(2,1)}', space=vmem, size = 0x4000, scoped, tag = 'scratch operand']
  #allocation4 [shape = 'bf16[4,8,8]{2,1,0:T(8,128)(2,1)}', space=vmem, size = 0x2000, scoped, tag = 'scratch operand']
  #allocation5 [shape = 'bf16[8,32]{1,0:T(8,128)(2,1)}', space=vmem, size = 0x800, scoped, tag = 'scratch operand']
  %s0 = inlined_call_operand.vmem [shape: f32[2,16,32], index: 0, kind: input, shape index: {}]
  %s1 = inlined_call_operand.vmem [shape: bf16[2,16,32], index: 1, kind: input, shape index: {}]
  %s2 = inlined_call_operand.vmem [shape: bf16[32,32], index: 2, kind: input, shape index: {}]
  %s3 = inlined_call_operand.vmem [shape: bf16[32,32], index: 3, kind: input, shape index: {}]
  %s4 = inlined_call_operand.hbm [shape: bf16[32,32], index: 4, kind: input, shape index: {}]
  %s5 = inlined_call_operand.vmem [shape: f32[1,32], index: 5, kind: input, shape index: {}]
  %s6 = inlined_call_operand.vmem [shape: f32[1,32], index: 6, kind: input, shape index: {}]
  %s7 = inlined_call_operand.hbm [shape: f32[1,32], index: 7, kind: input, shape index: {}]
  %s8 = inlined_call_operand.hbm [shape: bf16[32,32], index: 8, kind: input, shape index: {}]
  %s9 = inlined_call_operand.hbm [shape: f32[1,32], index: 9, kind: input, shape index: {}]
  %s10 = inlined_call_operand.vmem [shape: f32[1,32], index: 10, kind: input, shape index: {}]
  %s11 = inlined_call_operand.vmem [shape: f32[1,32], index: 11, kind: input, shape index: {}]
  %s12 = inlined_call_operand.vmem [shape: bf16[32,128], index: 12, kind: input, shape index: {}]
  %s13 = inlined_call_operand.vmem [shape: f32[1,128], index: 13, kind: input, shape index: {}]
  %s14 = inlined_call_operand.vmem [shape: bf16[128,32], index: 14, kind: input, shape index: {}]
  %s15 = inlined_call_operand.vmem [shape: f32[1,32], index: 15, kind: input, shape index: {}]
  %s16 = inlined_call_operand.vmem [shape: f32[1,32], index: 16, kind: input, shape index: {}]
  %s17 = inlined_call_operand.vmem [shape: f32[1,32], index: 17, kind: input, shape index: {}]
  %s18 = inlined_call_operand.hbm [shape: f32[2,16,32], index: 18, kind: output, shape index: {}]
  %s19 = sld [smem:[#allocation0]]
  $region125: #{tpu_custom_call.1} parent=0
    _
  %s21 = ssub.s32 1, %s19
  %s22 = scalar_select 0, %s21, %s19
  $region1: #{tpu_custom_call.1} parent=0
    #allocation6 [shape = 'u8[8192]{0}', space=vmem, size = 0x2000, scoped, tag = 'input window, operand 4, single buffered']
    #allocation7 [shape = 's32[2]{0}', space=sflag, size = 0x8, scoped, tag = 'scoped memory for tpu_custom_call.1']
    #allocation8 [shape = 's32[2]{0}', space=sflag, size = 0x8, scoped, tag = 'scoped memory for tpu_custom_call.1']
    #allocation9 [shape = 'u8[512]{0}', space=vmem, size = 0x400, scoped, tag = 'input window, operand 7, single buffered']
    #allocation10 [shape = 's32[1]{0}', space=sflag, size = 0x4, scoped, tag = 'scoped memory for tpu_custom_call.1']
    #allocation11 [shape = 'u8[8192]{0}', space=vmem, size = 0x2000, scoped, tag = 'input window, operand 8, single buffered']
    #allocation12 [shape = 'u8[512]{0}', space=vmem, size = 0x400, scoped, tag = 'input window, operand 9, single buffered']
    #allocation13 [shape = 's32[1]{0}', space=sflag, size = 0x4, scoped, tag = 'scoped memory for tpu_custom_call.1']
    #allocation14 [shape = 'u8[8192]{0}', space=vmem, size = 0x2000, scoped, tag = 'output window, operand 0']
    %23 = vsyncpa [#allocation7], 0
    %24 = vsyncpa [#allocation10], 0
    %25 = vsyncpa [#allocation13], 0
    %26 = vsyncpa [#allocation8], 0
    %s27 = scalar_lea.sflag [#allocation8], 1
    %28 = vsyncpa %s27, 0
    loop: start=0, step=1, limit=6
    $region2: #{tpu_custom_call.1} parent=1 // loop_pre_header
      _
    $region3: #{tpu_custom_call.1} parent=1 // loop_header
      %s30 = sphi 0, %s34
      %p31 = scmp.ge.s32.totalorder %s30, 6
      %s37 = sphi 0, %s49
      %s38 = sphi 0, %s45
      %s39 = sphi 0, %s37
      %s40 = sphi 0, %s38
      %s41 = sphi 0, %s39
      %s42 = sphi 0, %s40
      %s54 = sphi 0, %s56
      %s57 = sphi 0, %s54
      %s58 = sphi 0, %s57
      %s74 = sphi 0, %s58
      %s80 = sphi 0, %s82
      %s83 = sphi 0, %s80
      %s84 = sphi 0, %s83
      %s100 = sphi 0, %s84
      %s104 = sphi 0, %s104
      %s106 = sphi 0, %s104
      %s107 = sphi 0, %s106
      %s121 = sphi 0, %s107
      %s125 = sphi 0, %s125
      %s127 = sphi 0, %s125
      %s128 = sphi 0, %s127
      %s142 = sphi 0, %s128
      %s146 = sphi 0, %s146
      %s148 = sphi 0, %s146
      %s149 = sphi 0, %s148
      %s163 = sphi 0, %s149
      %s167 = sphi 0, %s167
      %s169 = sphi 0, %s167
      %s170 = sphi 0, %s169
      %s184 = sphi 0, %s170
      %s188 = sphi 0, %s188
      %s190 = sphi 0, %s188
      %s191 = sphi 0, %s190
      %s205 = sphi 0, %s191
      %s209 = sphi 0, %s209
      %s211 = sphi 0, %s209
      %s212 = sphi 0, %s211
      %s226 = sphi 0, %s212
      %s230 = sphi 0, %s230
      %s232 = sphi 0, %s230
      %s233 = sphi 0, %s232
      %s247 = sphi 0, %s233
      %s251 = sphi 0, %s251
      %s253 = sphi 0, %s251
      %s254 = sphi 0, %s253
      %s268 = sphi 0, %s254
      %s272 = sphi 0, %s272
      %s274 = sphi 0, %s272
      %s275 = sphi 0, %s274
      %s289 = sphi 0, %s275
      %s293 = sphi 0, %s293
      %s295 = sphi 0, %s293
      %s296 = sphi 0, %s295
      %s310 = sphi 0, %s296
      %s314 = sphi 0, %s314
      %s316 = sphi 0, %s314
      %s317 = sphi 0, %s316
      %s331 = sphi 0, %s317
      %s335 = sphi 0, %s335
      %s337 = sphi 0, %s335
      %s338 = sphi 0, %s337
      %s352 = sphi 0, %s338
      %s356 = sphi 0, %s356
      %s358 = sphi 0, %s356
      %s359 = sphi 0, %s358
      %s373 = sphi 0, %s359
      %s377 = sphi 0, %s377
      %s379 = sphi 0, %s377
      %s380 = sphi 0, %s379
      %s394 = sphi 0, %s380
      %s398 = sphi 0, %s398
      %s400 = sphi 0, %s398
      %s401 = sphi 0, %s400
      %s415 = sphi 0, %s401
      %s419 = sphi 0, %s419
      %s421 = sphi 0, %s419
      %s422 = sphi 0, %s421
      %s436 = sphi 0, %s422
      %s444 = sphi 0, %s446
      %s447 = sphi 0, %s444
      %s448 = sphi 0, %s447
      %s464 = sphi 0, %s448
    $region4: #{tpu_custom_call.1} parent=1 // loop_header_branch
      %33 = sbr.rel (%p31) target = $region8
    $region5: #{tpu_custom_call.1} parent=1 // loop_body
      %s35 = ssub.s32 %s30, 1
      %s36 = ssub.s32 %s30, 2
      %s43 = sadd.s32 1, %s38
      %p44 = scmp.ge.s32.totalorder %s43, 2
      %s45 = scalar_select %p44, 0, %s43
      %s46 = sadd.s32 1, %s37
      %s47 = scalar_select %p44, %s46, %s37
      %p48 = scmp.ge.s32.totalorder %s47, 2
      %s49 = scalar_select %p48, 0, %s47
      %s50 = ssub.s32 %s37, %s49
      %s51 = ssub.s32 %s38, %s45
      %s52 = sor.u32 %s50, %s51
      %p53 = scmp.eq.s32.totalorder %s52, 0
      %s55 = sadd.s32 %s54, 1
      %s56 = scalar_select %p53, %s54, %s55
      %p59 = pneg %p53
      %p60 = scmp.eq.s32.totalorder %s30, 3
      %p61 = por %p59, %p60
      %p62 = scmp.ne.s32.totalorder %s54, %s57
      %p63 = scmp.eq.s32.totalorder %s30, 0
      %p64 = por %p62, %p63
      %p65 = scmp.ne.s32.totalorder %s54, %s57
      %p66 = scmp.eq.s32.totalorder %s35, 3
      %p67 = por %p65, %p66
      %p68 = scmp.ne.s32.totalorder %s57, %s58
      %p69 = scmp.eq.s32.totalorder %s35, 0
      %p70 = por %p68, %p69
      %p71 = scmp.ne.s32.totalorder %s57, %s58
      %p72 = scmp.eq.s32.totalorder %s36, 3
      %p73 = por %p71, %p72
      %p75 = scmp.ne.s32.totalorder %s58, %s74
      %p76 = scmp.eq.s32.totalorder %s36, 0
      %p77 = por %p75, %p76
      %s78 = ssub.s32 %s37, %s49
      %p79 = scmp.eq.s32.totalorder %s78, 0
      %s81 = sadd.s32 %s80, 1
      %s82 = scalar_select %p79, %s80, %s81
      %p85 = pneg %p79
      %p86 = scmp.eq.s32.totalorder %s30, 3
      %p87 = por %p85, %p86
      %p88 = scmp.ne.s32.totalorder %s80, %s83
      %p89 = scmp.eq.s32.totalorder %s30, 0
      %p90 = por %p88, %p89
      %p91 = scmp.ne.s32.totalorder %s80, %s83
      %p92 = scmp.eq.s32.totalorder %s35, 3
      %p93 = por %p91, %p92
      %p94 = scmp.ne.s32.totalorder %s83, %s84
      %p95 = scmp.eq.s32.totalorder %s35, 0
      %p96 = por %p94, %p95
      %p97 = scmp.ne.s32.totalorder %s83, %s84
      %p98 = scmp.eq.s32.totalorder %s36, 3
      %p99 = por %p97, %p98
      %p101 = scmp.ne.s32.totalorder %s84, %s100
      %p102 = scmp.eq.s32.totalorder %s36, 0
      %p103 = por %p101, %p102
      %s105 = sadd.s32 %s104, 1
      %p108 = scmp.eq.s32.totalorder %s30, 3
      %p109 = scmp.ne.s32.totalorder %s104, %s106
      %p110 = scmp.eq.s32.totalorder %s30, 0
      %p111 = por %p109, %p110
      %p112 = scmp.ne.s32.totalorder %s104, %s106
      %p113 = scmp.eq.s32.totalorder %s35, 3
      %p114 = por %p112, %p113
      %p115 = scmp.ne.s32.totalorder %s106, %s107
      %p116 = scmp.eq.s32.totalorder %s35, 0
      %p117 = por %p115, %p116
      %p118 = scmp.ne.s32.totalorder %s106, %s107
      %p119 = scmp.eq.s32.totalorder %s36, 3
      %p120 = por %p118, %p119
      %p122 = scmp.ne.s32.totalorder %s107, %s121
      %p123 = scmp.eq.s32.totalorder %s36, 0
      %p124 = por %p122, %p123
      %s126 = sadd.s32 %s125, 1
      %p129 = scmp.eq.s32.totalorder %s30, 3
      %p130 = scmp.ne.s32.totalorder %s125, %s127
      %p131 = scmp.eq.s32.totalorder %s30, 0
      %p132 = por %p130, %p131
      %p133 = scmp.ne.s32.totalorder %s125, %s127
      %p134 = scmp.eq.s32.totalorder %s35, 3
      %p135 = por %p133, %p134
      %p136 = scmp.ne.s32.totalorder %s127, %s128
      %p137 = scmp.eq.s32.totalorder %s35, 0
      %p138 = por %p136, %p137
      %p139 = scmp.ne.s32.totalorder %s127, %s128
      %p140 = scmp.eq.s32.totalorder %s36, 3
      %p141 = por %p139, %p140
      %p143 = scmp.ne.s32.totalorder %s128, %s142
      %p144 = scmp.eq.s32.totalorder %s36, 0
      %p145 = por %p143, %p144
      %s147 = sadd.s32 %s146, 1
      %p150 = scmp.eq.s32.totalorder %s30, 3
      %p151 = scmp.ne.s32.totalorder %s146, %s148
      %p152 = scmp.eq.s32.totalorder %s30, 0
      %p153 = por %p151, %p152
      %p154 = scmp.ne.s32.totalorder %s146, %s148
      %p155 = scmp.eq.s32.totalorder %s35, 3
      %p156 = por %p154, %p155
      %p157 = scmp.ne.s32.totalorder %s148, %s149
      %p158 = scmp.eq.s32.totalorder %s35, 0
      %p159 = por %p157, %p158
      %p160 = scmp.ne.s32.totalorder %s148, %s149
      %p161 = scmp.eq.s32.totalorder %s36, 3
      %p162 = por %p160, %p161
      %p164 = scmp.ne.s32.totalorder %s149, %s163
      %p165 = scmp.eq.s32.totalorder %s36, 0
      %p166 = por %p164, %p165
      %s168 = sadd.s32 %s167, 1
      %p171 = scmp.eq.s32.totalorder %s30, 3
      %p172 = scmp.ne.s32.totalorder %s167, %s169
      %p173 = scmp.eq.s32.totalorder %s30, 0
      %p174 = por %p172, %p173
      %p175 = scmp.ne.s32.totalorder %s167, %s169
      %p176 = scmp.eq.s32.totalorder %s35, 3
      %p177 = por %p175, %p176
      %p178 = scmp.ne.s32.totalorder %s169, %s170
      %p179 = scmp.eq.s32.totalorder %s35, 0
      %p180 = por %p178, %p179
      %p181 = scmp.ne.s32.totalorder %s169, %s170
      %p182 = scmp.eq.s32.totalorder %s36, 3
      %p183 = por %p181, %p182
      %p185 = scmp.ne.s32.totalorder %s170, %s184
      %p186 = scmp.eq.s32.totalorder %s36, 0
      %p187 = por %p185, %p186
      %s189 = sadd.s32 %s188, 1
      %p192 = scmp.eq.s32.totalorder %s30, 3
      %p193 = scmp.ne.s32.totalorder %s188, %s190
      %p194 = scmp.eq.s32.totalorder %s30, 0
      %p195 = por %p193, %p194
      %p196 = scmp.ne.s32.totalorder %s188, %s190
      %p197 = scmp.eq.s32.totalorder %s35, 3
      %p198 = por %p196, %p197
      %p199 = scmp.ne.s32.totalorder %s190, %s191
      %p200 = scmp.eq.s32.totalorder %s35, 0
      %p201 = por %p199, %p200
      %p202 = scmp.ne.s32.totalorder %s190, %s191
      %p203 = scmp.eq.s32.totalorder %s36, 3
      %p204 = por %p202, %p203
      %p206 = scmp.ne.s32.totalorder %s191, %s205
      %p207 = scmp.eq.s32.totalorder %s36, 0
      %p208 = por %p206, %p207
      %s210 = sadd.s32 %s209, 1
      %p213 = scmp.eq.s32.totalorder %s30, 3
      %p214 = scmp.ne.s32.totalorder %s209, %s211
      %p215 = scmp.eq.s32.totalorder %s30, 0
      %p216 = por %p214, %p215
      %p217 = scmp.ne.s32.totalorder %s209, %s211
      %p218 = scmp.eq.s32.totalorder %s35, 3
      %p219 = por %p217, %p218
      %p220 = scmp.ne.s32.totalorder %s211, %s212
      %p221 = scmp.eq.s32.totalorder %s35, 0
      %p222 = por %p220, %p221
      %p223 = scmp.ne.s32.totalorder %s211, %s212
      %p224 = scmp.eq.s32.totalorder %s36, 3
      %p225 = por %p223, %p224
      %p227 = scmp.ne.s32.totalorder %s212, %s226
      %p228 = scmp.eq.s32.totalorder %s36, 0
      %p229 = por %p227, %p228
      %s231 = sadd.s32 %s230, 1
      %p234 = scmp.eq.s32.totalorder %s30, 3
      %p235 = scmp.ne.s32.totalorder %s230, %s232
      %p236 = scmp.eq.s32.totalorder %s30, 0
      %p237 = por %p235, %p236
      %p238 = scmp.ne.s32.totalorder %s230, %s232
      %p239 = scmp.eq.s32.totalorder %s35, 3
      %p240 = por %p238, %p239
      %p241 = scmp.ne.s32.totalorder %s232, %s233
      %p242 = scmp.eq.s32.totalorder %s35, 0
      %p243 = por %p241, %p242
      %p244 = scmp.ne.s32.totalorder %s232, %s233
      %p245 = scmp.eq.s32.totalorder %s36, 3
      %p246 = por %p244, %p245
      %p248 = scmp.ne.s32.totalorder %s233, %s247
      %p249 = scmp.eq.s32.totalorder %s36, 0
      %p250 = por %p248, %p249
      %s252 = sadd.s32 %s251, 1
      %p255 = scmp.eq.s32.totalorder %s30, 3
      %p256 = scmp.ne.s32.totalorder %s251, %s253
      %p257 = scmp.eq.s32.totalorder %s30, 0
      %p258 = por %p256, %p257
      %p259 = scmp.ne.s32.totalorder %s251, %s253
      %p260 = scmp.eq.s32.totalorder %s35, 3
      %p261 = por %p259, %p260
      %p262 = scmp.ne.s32.totalorder %s253, %s254
      %p263 = scmp.eq.s32.totalorder %s35, 0
      %p264 = por %p262, %p263
      %p265 = scmp.ne.s32.totalorder %s253, %s254
      %p266 = scmp.eq.s32.totalorder %s36, 3
      %p267 = por %p265, %p266
      %p269 = scmp.ne.s32.totalorder %s254, %s268
      %p270 = scmp.eq.s32.totalorder %s36, 0
      %p271 = por %p269, %p270
      %s273 = sadd.s32 %s272, 1
      %p276 = scmp.eq.s32.totalorder %s30, 3
      %p277 = scmp.ne.s32.totalorder %s272, %s274
      %p278 = scmp.eq.s32.totalorder %s30, 0
      %p279 = por %p277, %p278
      %p280 = scmp.ne.s32.totalorder %s272, %s274
      %p281 = scmp.eq.s32.totalorder %s35, 3
      %p282 = por %p280, %p281
      %p283 = scmp.ne.s32.totalorder %s274, %s275
      %p284 = scmp.eq.s32.totalorder %s35, 0
      %p285 = por %p283, %p284
      %p286 = scmp.ne.s32.totalorder %s274, %s275
      %p287 = scmp.eq.s32.totalorder %s36, 3
      %p288 = por %p286, %p287
      %p290 = scmp.ne.s32.totalorder %s275, %s289
      %p291 = scmp.eq.s32.totalorder %s36, 0
      %p292 = por %p290, %p291
      %s294 = sadd.s32 %s293, 1
      %p297 = scmp.eq.s32.totalorder %s30, 3
      %p298 = scmp.ne.s32.totalorder %s293, %s295
      %p299 = scmp.eq.s32.totalorder %s30, 0
      %p300 = por %p298, %p299
      %p301 = scmp.ne.s32.totalorder %s293, %s295
      %p302 = scmp.eq.s32.totalorder %s35, 3
      %p303 = por %p301, %p302
      %p304 = scmp.ne.s32.totalorder %s295, %s296
      %p305 = scmp.eq.s32.totalorder %s35, 0
      %p306 = por %p304, %p305
      %p307 = scmp.ne.s32.totalorder %s295, %s296
      %p308 = scmp.eq.s32.totalorder %s36, 3
      %p309 = por %p307, %p308
      %p311 = scmp.ne.s32.totalorder %s296, %s310
      %p312 = scmp.eq.s32.totalorder %s36, 0
      %p313 = por %p311, %p312
      %s315 = sadd.s32 %s314, 1
      %p318 = scmp.eq.s32.totalorder %s30, 3
      %p319 = scmp.ne.s32.totalorder %s314, %s316
      %p320 = scmp.eq.s32.totalorder %s30, 0
      %p321 = por %p319, %p320
      %p322 = scmp.ne.s32.totalorder %s314, %s316
      %p323 = scmp.eq.s32.totalorder %s35, 3
      %p324 = por %p322, %p323
      %p325 = scmp.ne.s32.totalorder %s316, %s317
      %p326 = scmp.eq.s32.totalorder %s35, 0
      %p327 = por %p325, %p326
      %p328 = scmp.ne.s32.totalorder %s316, %s317
      %p329 = scmp.eq.s32.totalorder %s36, 3
      %p330 = por %p328, %p329
      %p332 = scmp.ne.s32.totalorder %s317, %s331
      %p333 = scmp.eq.s32.totalorder %s36, 0
      %p334 = por %p332, %p333
      %s336 = sadd.s32 %s335, 1
      %p339 = scmp.eq.s32.totalorder %s30, 3
      %p340 = scmp.ne.s32.totalorder %s335, %s337
      %p341 = scmp.eq.s32.totalorder %s30, 0
      %p342 = por %p340, %p341
      %p343 = scmp.ne.s32.totalorder %s335, %s337
      %p344 = scmp.eq.s32.totalorder %s35, 3
      %p345 = por %p343, %p344
      %p346 = scmp.ne.s32.totalorder %s337, %s338
      %p347 = scmp.eq.s32.totalorder %s35, 0
      %p348 = por %p346, %p347
      %p349 = scmp.ne.s32.totalorder %s337, %s338
      %p350 = scmp.eq.s32.totalorder %s36, 3
      %p351 = por %p349, %p350
      %p353 = scmp.ne.s32.totalorder %s338, %s352
      %p354 = scmp.eq.s32.totalorder %s36, 0
      %p355 = por %p353, %p354
      %s357 = sadd.s32 %s356, 1
      %p360 = scmp.eq.s32.totalorder %s30, 3
      %p361 = scmp.ne.s32.totalorder %s356, %s358
      %p362 = scmp.eq.s32.totalorder %s30, 0
      %p363 = por %p361, %p362
      %p364 = scmp.ne.s32.totalorder %s356, %s358
      %p365 = scmp.eq.s32.totalorder %s35, 3
      %p366 = por %p364, %p365
      %p367 = scmp.ne.s32.totalorder %s358, %s359
      %p368 = scmp.eq.s32.totalorder %s35, 0
      %p369 = por %p367, %p368
      %p370 = scmp.ne.s32.totalorder %s358, %s359
      %p371 = scmp.eq.s32.totalorder %s36, 3
      %p372 = por %p370, %p371
      %p374 = scmp.ne.s32.totalorder %s359, %s373
      %p375 = scmp.eq.s32.totalorder %s36, 0
      %p376 = por %p374, %p375
      %s378 = sadd.s32 %s377, 1
      %p381 = scmp.eq.s32.totalorder %s30, 3
      %p382 = scmp.ne.s32.totalorder %s377, %s379
      %p383 = scmp.eq.s32.totalorder %s30, 0
      %p384 = por %p382, %p383
      %p385 = scmp.ne.s32.totalorder %s377, %s379
      %p386 = scmp.eq.s32.totalorder %s35, 3
      %p387 = por %p385, %p386
      %p388 = scmp.ne.s32.totalorder %s379, %s380
      %p389 = scmp.eq.s32.totalorder %s35, 0
      %p390 = por %p388, %p389
      %p391 = scmp.ne.s32.totalorder %s379, %s380
      %p392 = scmp.eq.s32.totalorder %s36, 3
      %p393 = por %p391, %p392
      %p395 = scmp.ne.s32.totalorder %s380, %s394
      %p396 = scmp.eq.s32.totalorder %s36, 0
      %p397 = por %p395, %p396
      %s399 = sadd.s32 %s398, 1
      %p402 = scmp.eq.s32.totalorder %s30, 3
      %p403 = scmp.ne.s32.totalorder %s398, %s400
      %p404 = scmp.eq.s32.totalorder %s30, 0
      %p405 = por %p403, %p404
      %p406 = scmp.ne.s32.totalorder %s398, %s400
      %p407 = scmp.eq.s32.totalorder %s35, 3
      %p408 = por %p406, %p407
      %p409 = scmp.ne.s32.totalorder %s400, %s401
      %p410 = scmp.eq.s32.totalorder %s35, 0
      %p411 = por %p409, %p410
      %p412 = scmp.ne.s32.totalorder %s400, %s401
      %p413 = scmp.eq.s32.totalorder %s36, 3
      %p414 = por %p412, %p413
      %p416 = scmp.ne.s32.totalorder %s401, %s415
      %p417 = scmp.eq.s32.totalorder %s36, 0
      %p418 = por %p416, %p417
      %s420 = sadd.s32 %s419, 1
      %p423 = scmp.eq.s32.totalorder %s30, 3
      %p424 = scmp.ne.s32.totalorder %s419, %s421
      %p425 = scmp.eq.s32.totalorder %s30, 0
      %p426 = por %p424, %p425
      %p427 = scmp.ne.s32.totalorder %s419, %s421
      %p428 = scmp.eq.s32.totalorder %s35, 3
      %p429 = por %p427, %p428
      %p430 = scmp.ne.s32.totalorder %s421, %s422
      %p431 = scmp.eq.s32.totalorder %s35, 0
      %p432 = por %p430, %p431
      %p433 = scmp.ne.s32.totalorder %s421, %s422
      %p434 = scmp.eq.s32.totalorder %s36, 3
      %p435 = por %p433, %p434
      %p437 = scmp.ne.s32.totalorder %s422, %s436
      %p438 = scmp.eq.s32.totalorder %s36, 0
      %p439 = por %p437, %p438
      %s440 = ssub.s32 %s37, %s49
      %s441 = ssub.s32 %s38, %s45
      %s442 = sor.u32 %s440, %s441
      %p443 = scmp.eq.s32.totalorder %s442, 0
      %s445 = sadd.s32 %s444, 1
      %s446 = scalar_select %p443, %s444, %s445
      %p449 = pneg %p443
      %p450 = scmp.eq.s32.totalorder %s30, 3
      %p451 = por %p449, %p450
      %p452 = scmp.ne.s32.totalorder %s444, %s447
      %p453 = scmp.eq.s32.totalorder %s30, 0
      %p454 = por %p452, %p453
      %p455 = scmp.ne.s32.totalorder %s444, %s447
      %p456 = scmp.eq.s32.totalorder %s35, 3
      %p457 = por %p455, %p456
      %p458 = scmp.ne.s32.totalorder %s447, %s448
      %p459 = scmp.eq.s32.totalorder %s35, 0
      %p460 = por %p458, %p459
      %p461 = scmp.ne.s32.totalorder %s447, %s448
      %p462 = scmp.eq.s32.totalorder %s36, 3
      %p463 = por %p461, %p462
      %p465 = scmp.ne.s32.totalorder %s448, %s464
      %p466 = scmp.eq.s32.totalorder %s36, 0
      %p467 = por %p465, %p466
      %p468 = scmp.le.s32.totalorder 1, %s30
      %p469 = scmp.lt.s32.totalorder %s30, 5
      %p470 = pnand %p468, %p469
      %p471 = pneg %p470
      // Predicated region
      $region9: #{tpu_custom_call.1} parent=5 // pred_check
        _
      $region10: #{tpu_custom_call.1} parent=5 // pred_check_branch
        %473 = sbr.rel (%p470) target = $region12
      $region11: #{tpu_custom_call.1} parent=5 // pred_region
        %s474 = ssub.s32 %s30, 1
        // Predicated region
        $region13: #{tpu_custom_call.1} parent=11 // pred_check
          %p475 = pneg %p96
        $region14: #{tpu_custom_call.1} parent=11 // pred_check_branch
          %477 = sbr.rel (%p475) target = $region16
        $region15: #{tpu_custom_call.1} parent=11 // pred_region
          %p478 = scmp.lt.s32.totalorder %s39, 1
          %s479 = scalar_select %p478, %s39, 1
          %s480 = smul.addr %s479, 2
          %s481 = smul.addr %s480, 4
          %s482 = scalar_lea.vmem %s1, %s481
        $region16: #{tpu_custom_call.1} parent=11 // pred_fallthru
          _
        // Predicated region
        $region17: #{tpu_custom_call.1} parent=11 // pred_check
          %p483 = pneg %p117
        $region18: #{tpu_custom_call.1} parent=11 // pred_check_branch
          %485 = sbr.rel (%p483) target = $region20
        $region19: #{tpu_custom_call.1} parent=11 // pred_region
          _
        $region20: #{tpu_custom_call.1} parent=11 // pred_fallthru
          _
        // Predicated region
        $region21: #{tpu_custom_call.1} parent=11 // pred_check
          %p486 = pneg %p138
        $region22: #{tpu_custom_call.1} parent=11 // pred_check_branch
          %488 = sbr.rel (%p486) target = $region24
        $region23: #{tpu_custom_call.1} parent=11 // pred_region
          _
        $region24: #{tpu_custom_call.1} parent=11 // pred_fallthru
          _
        // Predicated region
        $region25: #{tpu_custom_call.1} parent=11 // pred_check
          %p489 = pneg %p159
        $region26: #{tpu_custom_call.1} parent=11 // pred_check_branch
          %491 = sbr.rel (%p489) target = $region28
        $region27: #{tpu_custom_call.1} parent=11 // pred_region
          %s493 = ssub.s32 256, 256
          %494 = vsyncadd [#allocation7], %s493
          %s495 = sshll.u32 [#allocation6], 4
          %s496 = int_to_ptr.vmem [resolvable:$true] %s495
          %501 = dma.hbm_to_vmem [thread:$0]  %s4, 256, %s496, [#allocation7], 64, 64, 4
        $region28: #{tpu_custom_call.1} parent=11 // pred_fallthru
          _
        // Predicated region
        $region29: #{tpu_custom_call.1} parent=11 // pred_check
          %p502 = pneg %p180
        $region30: #{tpu_custom_call.1} parent=11 // pred_check_branch
          %504 = sbr.rel (%p502) target = $region32
        $region31: #{tpu_custom_call.1} parent=11 // pred_region
          _
        $region32: #{tpu_custom_call.1} parent=11 // pred_fallthru
          _
        // Predicated region
        $region33: #{tpu_custom_call.1} parent=11 // pred_check
          %p505 = pneg %p201
        $region34: #{tpu_custom_call.1} parent=11 // pred_check_branch
          %507 = sbr.rel (%p505) target = $region36
        $region35: #{tpu_custom_call.1} parent=11 // pred_region
          _
        $region36: #{tpu_custom_call.1} parent=11 // pred_fallthru
          _
        // Predicated region
        $region37: #{tpu_custom_call.1} parent=11 // pred_check
          %p508 = pneg %p222
        $region38: #{tpu_custom_call.1} parent=11 // pred_check_branch
          %510 = sbr.rel (%p508) target = $region40
        $region39: #{tpu_custom_call.1} parent=11 // pred_region
          %s512 = ssub.s32 16, 16
          %513 = vsyncadd [#allocation10], %s512
          %s515 = sshll.u32 [#allocation9], 4
          %s516 = int_to_ptr.vmem [resolvable:$true] %s515
          %518 = dma.hbm_to_vmem [thread:$0]  %s7, 16, %s516, [#allocation10]
        $region40: #{tpu_custom_call.1} parent=11 // pred_fallthru
          _
        // Predicated region
        $region41: #{tpu_custom_call.1} parent=11 // pred_check
          %p519 = pneg %p243
        $region42: #{tpu_custom_call.1} parent=11 // pred_check_branch
          %521 = sbr.rel (%p519) target = $region44
        $region43: #{tpu_custom_call.1} parent=11 // pred_region
          %s523 = ssub.s32 256, 256
          %524 = vsyncadd [#allocation10], %s523
          %s525 = sshll.u32 [#allocation11], 4
          %s526 = int_to_ptr.vmem [resolvable:$true] %s525
          %531 = dma.hbm_to_vmem [thread:$0]  %s8, 256, %s526, [#allocation10], 64, 64, 4
        $region44: #{tpu_custom_call.1} parent=11 // pred_fallthru
          _
        // Predicated region
        $region45: #{tpu_custom_call.1} parent=11 // pred_check
          %p532 = pneg %p264
        $region46: #{tpu_custom_call.1} parent=11 // pred_check_branch
          %534 = sbr.rel (%p532) target = $region48
        $region47: #{tpu_custom_call.1} parent=11 // pred_region
          %s536 = ssub.s32 16, 16
          %537 = vsyncadd [#allocation13], %s536
          %s539 = sshll.u32 [#allocation12], 4
          %s540 = int_to_ptr.vmem [resolvable:$true] %s539
          %542 = dma.hbm_to_vmem [thread:$0]  %s9, 16, %s540, [#allocation13]
        $region48: #{tpu_custom_call.1} parent=11 // pred_fallthru
          _
        // Predicated region
        $region49: #{tpu_custom_call.1} parent=11 // pred_check
          %p543 = pneg %p285
        $region50: #{tpu_custom_call.1} parent=11 // pred_check_branch
          %545 = sbr.rel (%p543) target = $region52
        $region51: #{tpu_custom_call.1} parent=11 // pred_region
          _
        $region52: #{tpu_custom_call.1} parent=11 // pred_fallthru
          _
        // Predicated region
        $region53: #{tpu_custom_call.1} parent=11 // pred_check
          %p546 = pneg %p306
        $region54: #{tpu_custom_call.1} parent=11 // pred_check_branch
          %548 = sbr.rel (%p546) target = $region56
        $region55: #{tpu_custom_call.1} parent=11 // pred_region
          _
        $region56: #{tpu_custom_call.1} parent=11 // pred_fallthru
          _
        // Predicated region
        $region57: #{tpu_custom_call.1} parent=11 // pred_check
          %p549 = pneg %p327
        $region58: #{tpu_custom_call.1} parent=11 // pred_check_branch
          %551 = sbr.rel (%p549) target = $region60
        $region59: #{tpu_custom_call.1} parent=11 // pred_region
          _
        $region60: #{tpu_custom_call.1} parent=11 // pred_fallthru
          _
        // Predicated region
        $region61: #{tpu_custom_call.1} parent=11 // pred_check
          %p552 = pneg %p348
        $region62: #{tpu_custom_call.1} parent=11 // pred_check_branch
          %554 = sbr.rel (%p552) target = $region64
        $region63: #{tpu_custom_call.1} parent=11 // pred_region
          _
        $region64: #{tpu_custom_call.1} parent=11 // pred_fallthru
          _
        // Predicated region
        $region65: #{tpu_custom_call.1} parent=11 // pred_check
          %p555 = pneg %p369
        $region66: #{tpu_custom_call.1} parent=11 // pred_check_branch
          %557 = sbr.rel (%p555) target = $region68
        $region67: #{tpu_custom_call.1} parent=11 // pred_region
          _
        $region68: #{tpu_custom_call.1} parent=11 // pred_fallthru
          _
        // Predicated region
        $region69: #{tpu_custom_call.1} parent=11 // pred_check
          %p558 = pneg %p390
        $region70: #{tpu_custom_call.1} parent=11 // pred_check_branch
          %560 = sbr.rel (%p558) target = $region72
        $region71: #{tpu_custom_call.1} parent=11 // pred_region
          _
        $region72: #{tpu_custom_call.1} parent=11 // pred_fallthru
          _
        // Predicated region
        $region73: #{tpu_custom_call.1} parent=11 // pred_check
          %p561 = pneg %p411
        $region74: #{tpu_custom_call.1} parent=11 // pred_check_branch
          %563 = sbr.rel (%p561) target = $region76
        $region75: #{tpu_custom_call.1} parent=11 // pred_region
          _
        $region76: #{tpu_custom_call.1} parent=11 // pred_fallthru
          _
        // Predicated region
        $region77: #{tpu_custom_call.1} parent=11 // pred_check
          %p564 = pneg %p432
        $region78: #{tpu_custom_call.1} parent=11 // pred_check_branch
          %566 = sbr.rel (%p564) target = $region80
        $region79: #{tpu_custom_call.1} parent=11 // pred_region
          _
        $region80: #{tpu_custom_call.1} parent=11 // pred_fallthru
          _
      $region12: #{tpu_custom_call.1} parent=5 // pred_fallthru
        _
      %p567 = scmp.lt.s32.totalorder %s30, 4
      // Predicated region
      $region81: #{tpu_custom_call.1} parent=5 // pred_check
        %p568 = pneg %p567
      $region82: #{tpu_custom_call.1} parent=5 // pred_check_branch
        %570 = sbr.rel (%p568) target = $region84
      $region83: #{tpu_custom_call.1} parent=5 // pred_region
        // Predicated region
        $region85: #{tpu_custom_call.1} parent=83 // pred_check
          %p571 = pneg %p64
        $region86: #{tpu_custom_call.1} parent=83 // pred_check_branch
          %573 = sbr.rel (%p571) target = $region88
        $region87: #{tpu_custom_call.1} parent=83 // pred_region
          %p574 = scmp.lt.s32.totalorder %s37, 1
          %s575 = scalar_select %p574, %s37, 1
          %p576 = scmp.lt.s32.totalorder %s38, 1
          %s577 = scalar_select %p576, %s38, 1
          %s578 = smul.addr %s575, 2
          %s579 = sadd.s32 %s577, %s578
          %s580 = smul.addr %s579, 8
          %s581 = scalar_lea.vmem %s0, %s580
        $region88: #{tpu_custom_call.1} parent=83 // pred_fallthru
          _
      $region84: #{tpu_custom_call.1} parent=5 // pred_fallthru
        _
      %p582 = scmp.le.s32.totalorder 1, %s30
      %p583 = scmp.lt.s32.totalorder %s30, 5
      %p584 = pnand %p582, %p583
      %p585 = pneg %p584
      // Predicated region
      $region89: #{tpu_custom_call.1} parent=5 // pred_check
        _
      $region90: #{tpu_custom_call.1} parent=5 // pred_check_branch
        %587 = sbr.rel (%p584) target = $region92
      $region91: #{tpu_custom_call.1} parent=5 // pred_region
        %s588 = ssub.s32 %s30, 1
        // Predicated region
        $region93: #{tpu_custom_call.1} parent=91 // pred_check
          %p589 = pneg %p159
        $region94: #{tpu_custom_call.1} parent=91 // pred_check_branch
          %591 = sbr.rel (%p589) target = $region96
        $region95: #{tpu_custom_call.1} parent=91 // pred_region
          %592 = dma.done [#allocation7], 256
        $region96: #{tpu_custom_call.1} parent=91 // pred_fallthru
          _
        // Predicated region
        $region97: #{tpu_custom_call.1} parent=91 // pred_check
          %p593 = pneg %p222
        $region98: #{tpu_custom_call.1} parent=91 // pred_check_branch
          %595 = sbr.rel (%p593) target = $region100
        $region99: #{tpu_custom_call.1} parent=91 // pred_region
          %596 = dma.done [#allocation10], 16
        $region100: #{tpu_custom_call.1} parent=91 // pred_fallthru
          _
        // Predicated region
        $region101: #{tpu_custom_call.1} parent=91 // pred_check
          %p597 = pneg %p243
        $region102: #{tpu_custom_call.1} parent=91 // pred_check_branch
          %599 = sbr.rel (%p597) target = $region104
        $region103: #{tpu_custom_call.1} parent=91 // pred_region
          %600 = dma.done [#allocation10], 256
        $region104: #{tpu_custom_call.1} parent=91 // pred_fallthru
          _
        // Predicated region
        $region105: #{tpu_custom_call.1} parent=91 // pred_check
          %p601 = pneg %p264
        $region106: #{tpu_custom_call.1} parent=91 // pred_check_branch
          %603 = sbr.rel (%p601) target = $region108
        $region107: #{tpu_custom_call.1} parent=91 // pred_region
          %604 = dma.done [#allocation13], 16
        $region108: #{tpu_custom_call.1} parent=91 // pred_fallthru
          _
        %p605 = scmp.lt.s32.totalorder %s39, 1
        %s606 = scalar_select %p605, %s39, 1
        %p607 = scmp.lt.s32.totalorder %s40, 1
        %s608 = scalar_select %p607, %s40, 1
        %s609 = smul.addr %s606, 2
        %s610 = sadd.s32 %s608, %s609
        %s611 = smul.addr %s610, 8
        %s612 = scalar_lea.vmem %s0, %s611
        %p613 = pneg %p70
        %p614 = pneg %p67
        %p615 = scmp.lt.s32.totalorder %s39, 1
        %s616 = scalar_select %p615, %s39, 1
        %s617 = smul.addr %s616, 2
        %s618 = smul.addr %s617, 4
        %s619 = scalar_lea.vmem %s1, %s618
        %p620 = pneg %p96
        %p621 = pneg %p93
        %p622 = pneg %p117
        %p623 = pneg %p114
        %p624 = pneg %p138
        %p625 = pneg %p135
        %p626 = pneg %p159
        %p627 = pneg %p156
        %p628 = pneg %p180
        %p629 = pneg %p177
        %p630 = pneg %p201
        %p631 = pneg %p198
        %p632 = pneg %p222
        %p633 = pneg %p219
        %p634 = pneg %p243
        %p635 = pneg %p240
        %p636 = pneg %p264
        %p637 = pneg %p261
        %p638 = pneg %p285
        %p639 = pneg %p282
        %p640 = pneg %p306
        %p641 = pneg %p303
        %p642 = pneg %p327
        %p643 = pneg %p324
        %p644 = pneg %p348
        %p645 = pneg %p345
        %p646 = pneg %p369
        %p647 = pneg %p366
        %p648 = pneg %p390
        %p649 = pneg %p387
        %p650 = pneg %p411
        %p651 = pneg %p408
        %p652 = pneg %p432
        %p653 = pneg %p429
        %p654 = pneg %p460
        %p655 = pneg %p457
        %s656 = sand.u32 %s447, 1
        %s657 = scalar_lea.sflag [#allocation8], %s656
        %s658 = sand.u32 %s447, 1
        %s659 = smul.addr %s658, 8
        %s660 = scalar_lea.vmem [#allocation14], %s659
        %p661 = scmp.lt.s32.totalorder %s39, 1
        %s662 = scalar_select %p661, %s39, 1
        %p663 = scmp.lt.s32.totalorder %s40, 1
        %s664 = scalar_select %p663, %s40, 1
        %s665 = smul.addr %s662, 2
        %s666 = sadd.s32 %s664, %s665
        %s667 = smul.addr %s666, 8
        %s668 = scalar_lea.vmem %s0, %s667
        %p669 = scmp.lt.s32.totalorder %s39, 1
        %s670 = scalar_select %p669, %s39, 1
        %s671 = smul.addr %s670, 2
        %s672 = smul.addr %s671, 4
        %s673 = scalar_lea.vmem %s1, %s672
        %p675 = scmp.eq.s32.totalorder %s40, 0
        // Predicated region
        $region109: #{tpu_custom_call.1} parent=91 // pred_check
          %p676 = pneg %p675
        $region110: #{tpu_custom_call.1} parent=91 // pred_check_branch
          %678 = sbr.rel (%p676) target = $region112
        $region111: #{tpu_custom_call.1} parent=91 // pred_region
          %v679 = vld [vmem:[%s673] sm:$0xf]
          %v680 = vld [vmem:[%s673 + $0x4] sm:$0xf]
          %v681 = vld [vmem:[%s3] sm:$0xf]
          %v682 = vld [vmem:[%s3 + $0x4] sm:$0xf]
          %v683 = vld [vmem:[%s3 + $0x8] sm:$0xf]
          %v684 = vld [vmem:[%s3 + $0xc] sm:$0xf]
          %v685 = vld [vmem:[%s6] sm:$0x1]
          %v687 = vlaneseq
          %v688 = vshrl.u32 %v687, 7
          %v689 = vsub.s32 0, %v688
          %v690 = vrot.slane %v685, %v689
          %v694 = vunpack.c.l.b16 %v679
          %v695 = vunpack.c.l.b16 %v680
          %v696 = vpack.c.b16 %v695, %v694
          %v701 = vunpack.c.l.b16 %v681
          %v702 = vunpack.c.l.b16 %v682
          %v703 = vunpack.c.l.b16 %v683
          %v704 = vunpack.c.l.b16 %v684
          %v705 = vpack.c.b16 %v702, %v701
          %v706 = vpack.c.b16 %v704, %v703
          %vm709 = vcmask 261120
          %v711 = vsel %vm709, %v696, 0
          %713 = vmatprep.subr.bf16.mxu0 0
          %714 = vmatpush1.bf16.msra.mxu0 %v705
          %715 = vmatprep.subr.bf16.mxu0 0
          %716 = vmatpush1.bf16.msra.mxu0 %v706
          %717 = vmatprep.subr.bf16.mxu0 0
          %718 = vmatpush1.bf16.msra.mxu0 0
          %719 = vmatprep.subr.bf16.mxu0 0
          %720 = vmatpush1.bf16.msra.mxu0 0
          %721 = vmatprep.subr.bf16.mxu0 0
          %722 = vmatpush1.bf16.msra.mxu0 0
          %723 = vmatprep.subr.bf16.mxu0 0
          %724 = vmatpush1.bf16.msra.mxu0 0
          %725 = vmatprep.subr.bf16.mxu0 0
          %726 = vmatpush1.bf16.msra.mxu0 0
          %727 = vmatprep.subr.bf16.mxu0 0
          %728 = vmatpush1.bf16.msra.mxu0 0
          %729 = vmatprep.subr.bf16.mxu0 0
          %730 = vmatpush1.bf16.msra.mxu0 0
          %731 = vmatprep.subr.bf16.mxu0 0
          %732 = vmatpush1.bf16.msra.mxu0 0
          %733 = vmatprep.subr.bf16.mxu0 0
          %734 = vmatpush1.bf16.msra.mxu0 0
          %735 = vmatprep.subr.bf16.mxu0 0
          %736 = vmatpush1.bf16.msra.mxu0 0
          %737 = vmatprep.subr.bf16.mxu0 0
          %738 = vmatpush1.bf16.msra.mxu0 0
          %739 = vmatprep.subr.bf16.mxu0 0
          %740 = vmatpush1.bf16.msra.mxu0 0
          %741 = vmatprep.subr.bf16.mxu0 0
          %742 = vmatpush1.bf16.msra.mxu0 0
          %743 = vmatprep.subr.bf16.mxu0 0
          %744 = vmatpush1.bf16.msra.mxu0 0
          %745 = vmatprep.mubr.bf16.mxu0 0
          %746 = vmatmul.mubr.bf16.gmra.mrb[0].mxu0 %v711
          %v747 = vpop.f32.mrb[0].mxu0
          %v748 = vadd.f32 %v690, %v747
          %v749 = vpop.f32.mrb[0].mxu0
          %v750 = vpop.f32.mrb[0].mxu0
          %v751 = vadd.f32 %v690, %v750
          %v752 = vpop.f32.mrb[0].mxu0
          %753 = vdwg.mxu0
          %v754 = vld [vmem:[#allocation6] sm:$0xf]
          %v755 = vld [vmem:[#allocation6 + $0x4] sm:$0xf]
          %v756 = vld [vmem:[#allocation6 + $0x8] sm:$0xf]
          %v757 = vld [vmem:[#allocation6 + $0xc] sm:$0xf]
          %v758 = vld [vmem:[#allocation9] sm:$0x1]
          %v760 = vlaneseq
          %v761 = vshrl.u32 %v760, 7
          %v762 = vsub.s32 0, %v761
          %v763 = vrot.slane %v758, %v762
          %v769 = vunpack.c.l.b16 %v754
          %v770 = vunpack.c.l.b16 %v755
          %v771 = vunpack.c.l.b16 %v756
          %v772 = vunpack.c.l.b16 %v757
          %v773 = vpack.c.b16 %v770, %v769
          %v774 = vpack.c.b16 %v772, %v771
          %777 = vmatprep.subr.bf16.mxu0 0
          %778 = vmatpush1.bf16.msra.mxu0 %v773
          %779 = vmatprep.subr.bf16.mxu0 0
          %780 = vmatpush1.bf16.msra.mxu0 %v774
          %781 = vmatprep.subr.bf16.mxu0 0
          %782 = vmatpush1.bf16.msra.mxu0 0
          %783 = vmatprep.subr.bf16.mxu0 0
          %784 = vmatpush1.bf16.msra.mxu0 0
          %785 = vmatprep.subr.bf16.mxu0 0
          %786 = vmatpush1.bf16.msra.mxu0 0
          %787 = vmatprep.subr.bf16.mxu0 0
          %788 = vmatpush1.bf16.msra.mxu0 0
          %789 = vmatprep.subr.bf16.mxu0 0
          %790 = vmatpush1.bf16.msra.mxu0 0
          %791 = vmatprep.subr.bf16.mxu0 0
          %792 = vmatpush1.bf16.msra.mxu0 0
          %793 = vmatprep.subr.bf16.mxu0 0
          %794 = vmatpush1.bf16.msra.mxu0 0
          %795 = vmatprep.subr.bf16.mxu0 0
          %796 = vmatpush1.bf16.msra.mxu0 0
          %797 = vmatprep.subr.bf16.mxu0 0
          %798 = vmatpush1.bf16.msra.mxu0 0
          %799 = vmatprep.subr.bf16.mxu0 0
          %800 = vmatpush1.bf16.msra.mxu0 0
          %801 = vmatprep.subr.bf16.mxu0 0
          %802 = vmatpush1.bf16.msra.mxu0 0
          %803 = vmatprep.subr.bf16.mxu0 0
          %804 = vmatpush1.bf16.msra.mxu0 0
          %805 = vmatprep.subr.bf16.mxu0 0
          %806 = vmatpush1.bf16.msra.mxu0 0
          %807 = vmatprep.subr.bf16.mxu0 0
          %808 = vmatpush1.bf16.msra.mxu0 0
          %809 = vmatprep.mubr.bf16.mxu0 0
          %810 = vmatmul.mubr.bf16.gmra.mrb[0].mxu0 %v711
          %v811 = vpop.f32.mrb[0].mxu0
          %v812 = vadd.f32 %v763, %v811
          %v813 = vpop.f32.mrb[0].mxu0
          %v814 = vpop.f32.mrb[0].mxu0
          %v815 = vadd.f32 %v763, %v814
          %v816 = vpop.f32.mrb[0].mxu0
          %817 = vdwg.mxu0
          %v818 = vpack.c.bf16 %v751, %v748
          %vm819 = vcmask 64512
          %820 = vst.msk [vmem:[#allocation2] sm:$0xff] %vm819, %v818
          %v821 = vpack.c.bf16 %v815, %v812
          %822 = vst.msk [vmem:[#allocation3] sm:$0xff] %vm819, %v821
          %824 = vrot.lane.b32.xlu0 %v818, 120
          %v825 = vpop.permute.xlu0 %824
          %s827 = sadd.s32 0, 1
          %s828 = smul.addr %s827, 8
          %s829 = scalar_lea.vmem [#allocation2], %s828
          %830 = vst.msk [vmem:[%s829] sm:$0xff] %vm819, %v825
          %832 = vrot.lane.b32.xlu0 %v821, 120
          %v833 = vpop.permute.xlu0 %832
          %s835 = smul.addr %s827, 8
          %s836 = scalar_lea.vmem [#allocation3], %s835
          %837 = vst.msk [vmem:[%s836] sm:$0xff] %vm819, %v833
          %838 = vrot.lane.b32.xlu0 %v818, 112
          %v839 = vpop.permute.xlu0 %838
          %s841 = sadd.s32 0, 2
          %s842 = smul.addr %s841, 8
          %s843 = scalar_lea.vmem [#allocation2], %s842
          %844 = vst.msk [vmem:[%s843] sm:$0xff] %vm819, %v839
          %845 = vrot.lane.b32.xlu0 %v821, 112
          %v846 = vpop.permute.xlu0 %845
          %s848 = smul.addr %s841, 8
          %s849 = scalar_lea.vmem [#allocation3], %s848
          %850 = vst.msk [vmem:[%s849] sm:$0xff] %vm819, %v846
          %851 = vrot.lane.b32.xlu0 %v818, 104
          %v852 = vpop.permute.xlu0 %851
          %s854 = sadd.s32 0, 3
          %s855 = smul.addr %s854, 8
          %s856 = scalar_lea.vmem [#allocation2], %s855
          %857 = vst.msk [vmem:[%s856] sm:$0xff] %vm819, %v852
          %858 = vrot.lane.b32.xlu0 %v821, 104
          %v859 = vpop.permute.xlu0 %858
          %s861 = smul.addr %s854, 8
          %s862 = scalar_lea.vmem [#allocation3], %s861
          %863 = vst.msk [vmem:[%s862] sm:$0xff] %vm819, %v859
        $region112: #{tpu_custom_call.1} parent=91 // pred_fallthru
          _
        %v864 = vld [vmem:[%s668] sm:$0xff]
        %v865 = vpack.c.bf16 %v864, %v864
        %v866 = vld [vmem:[%s2] sm:$0xf]
        %v867 = vld [vmem:[%s2 + $0x4] sm:$0xf]
        %v868 = vld [vmem:[%s2 + $0x8] sm:$0xf]
        %v869 = vld [vmem:[%s2 + $0xc] sm:$0xf]
        %v870 = vld [vmem:[%s5] sm:$0x1]
        %v872 = vlaneseq
        %v873 = vshrl.u32 %v872, 7
        %v874 = vsub.s32 0, %v873
        %v875 = vrot.slane %v870, %v874
        %v881 = vunpack.c.l.b16 %v866
        %v882 = vunpack.c.l.b16 %v867
        %v883 = vunpack.c.l.b16 %v868
        %v884 = vunpack.c.l.b16 %v869
        %v885 = vpack.c.b16 %v882, %v881
        %v886 = vpack.c.b16 %v884, %v883
        %vm889 = vcmask 261120
        %v891 = vsel %vm889, %v865, 0
        %893 = vmatprep.subr.bf16.mxu0 0
        %894 = vmatpush1.bf16.msra.mxu0 %v885
        %895 = vmatprep.subr.bf16.mxu0 0
        %896 = vmatpush1.bf16.msra.mxu0 %v886
        %897 = vmatprep.subr.bf16.mxu0 0
        %898 = vmatpush1.bf16.msra.mxu0 0
        %899 = vmatprep.subr.bf16.mxu0 0
        %900 = vmatpush1.bf16.msra.mxu0 0
        %901 = vmatprep.subr.bf16.mxu0 0
        %902 = vmatpush1.bf16.msra.mxu0 0
        %903 = vmatprep.subr.bf16.mxu0 0
        %904 = vmatpush1.bf16.msra.mxu0 0
        %905 = vmatprep.subr.bf16.mxu0 0
        %906 = vmatpush1.bf16.msra.mxu0 0
        %907 = vmatprep.subr.bf16.mxu0 0
        %908 = vmatpush1.bf16.msra.mxu0 0
        %909 = vmatprep.subr.bf16.mxu0 0
        %910 = vmatpush1.bf16.msra.mxu0 0
        %911 = vmatprep.subr.bf16.mxu0 0
        %912 = vmatpush1.bf16.msra.mxu0 0
        %913 = vmatprep.subr.bf16.mxu0 0
        %914 = vmatpush1.bf16.msra.mxu0 0
        %915 = vmatprep.subr.bf16.mxu0 0
        %916 = vmatpush1.bf16.msra.mxu0 0
        %917 = vmatprep.subr.bf16.mxu0 0
        %918 = vmatpush1.bf16.msra.mxu0 0
        %919 = vmatprep.subr.bf16.mxu0 0
        %920 = vmatpush1.bf16.msra.mxu0 0
        %921 = vmatprep.subr.bf16.mxu0 0
        %922 = vmatpush1.bf16.msra.mxu0 0
        %923 = vmatprep.subr.bf16.mxu0 0
        %924 = vmatpush1.bf16.msra.mxu0 0
        %925 = vmatprep.mubr.bf16.mxu0 0
        %926 = vmatmul.mubr.bf16.gmra.mrb[0].mxu0 %v891
        %v927 = vpop.f32.mrb[0].mxu0
        %v928 = vadd.f32 %v875, %v927
        %v929 = vpop.f32.mrb[0].mxu0
        %v930 = vpop.f32.mrb[0].mxu0
        %v931 = vpop.f32.mrb[0].mxu0
        %932 = vdwg.mxu0
        %v933 = vmul.f32 %v928, 0.35355338
        %v934 = vpack.c.bf16 %v933, %v933
        %vm935 = vcmask 60416
        %936 = vst.msk [vmem:[#allocation4] sm:$0xf] %vm935, %v934
        %v938 = vunpack.c.l.b16 %v934
        %v939 = vpack.c.b16 %v938, %v938
        %940 = vrot.lane.b32.xlu0 %v939, 120
        %v941 = vpop.permute.xlu0 %940
        %s943 = scalar_lea.vmem [#allocation4], 4
        %944 = vst.msk [vmem:[%s943] sm:$0xf] %vm935, %v941
        %945 = vrot.lane.b32.xlu0 %v939, 112
        %v946 = vpop.permute.xlu0 %945
        %s948 = scalar_lea.vmem [#allocation4], 8
        %949 = vst.msk [vmem:[%s948] sm:$0xf] %vm935, %v946
        %950 = vrot.lane.b32.xlu0 %v939, 104
        %v951 = vpop.permute.xlu0 %950
        %s953 = scalar_lea.vmem [#allocation4], 12
        %954 = vst.msk [vmem:[%s953] sm:$0xf] %vm935, %v951
        %v955 = vld [vmem:[#allocation4] sm:$0xf]
        %v956 = vld [vmem:[#allocation4 + $0x4] sm:$0xf]
        %v957 = vld [vmem:[#allocation4 + $0x8] sm:$0xf]
        %v958 = vld [vmem:[#allocation4 + $0xc] sm:$0xf]
        %v959 = vld [vmem:[#allocation2] sm:$0xff]
        %v960 = vld [vmem:[#allocation2 + $0x8] sm:$0xff]
        %v961 = vld [vmem:[#allocation2 + $0x10] sm:$0xff]
        %v962 = vld [vmem:[#allocation2 + $0x18] sm:$0xff]
        %vm963 = vcmask 64512
        %v965 = vsel %vm963, %v955, 0
        %v968 = vsel %vm963, %v959, 0
        %970 = vmatprep.subr.bf16.mxu0 0
        %971 = vmatpush1.bf16.xpose.msra.mxu0 %v968
        %972 = vmatprep.subr.bf16.mxu0 0
        %973 = vmatpush1.bf16.xpose.msra.mxu0 0
        %974 = vmatprep.subr.bf16.mxu0 0
        %975 = vmatpush1.bf16.xpose.msra.mxu0 0
        %976 = vmatprep.subr.bf16.mxu0 0
        %977 = vmatpush1.bf16.xpose.msra.mxu0 0
        %978 = vmatprep.subr.bf16.mxu0 0
        %979 = vmatpush1.bf16.xpose.msra.mxu0 0
        %980 = vmatprep.subr.bf16.mxu0 0
        %981 = vmatpush1.bf16.xpose.msra.mxu0 0
        %982 = vmatprep.subr.bf16.mxu0 0
        %983 = vmatpush1.bf16.xpose.msra.mxu0 0
        %984 = vmatprep.subr.bf16.mxu0 0
        %985 = vmatpush1.bf16.xpose.msra.mxu0 0
        %986 = vmatprep.subr.bf16.mxu0 0
        %987 = vmatpush1.bf16.xpose.msra.mxu0 0
        %988 = vmatprep.subr.bf16.mxu0 0
        %989 = vmatpush1.bf16.xpose.msra.mxu0 0
        %990 = vmatprep.subr.bf16.mxu0 0
        %991 = vmatpush1.bf16.xpose.msra.mxu0 0
        %992 = vmatprep.subr.bf16.mxu0 0
        %993 = vmatpush1.bf16.xpose.msra.mxu0 0
        %994 = vmatprep.subr.bf16.mxu0 0
        %995 = vmatpush1.bf16.xpose.msra.mxu0 0
        %996 = vmatprep.subr.bf16.mxu0 0
        %997 = vmatpush1.bf16.xpose.msra.mxu0 0
        %998 = vmatprep.subr.bf16.mxu0 0
        %999 = vmatpush1.bf16.xpose.msra.mxu0 0
        %1000 = vmatprep.subr.bf16.mxu0 0
        %1001 = vmatpush1.bf16.xpose.msra.mxu0 0
        %1002 = vmatprep.mubr.bf16.mxu0 0
        %1003 = vmatmul.mubr.bf16.gmra.mrb[0].mxu0 %v965
        %v1004 = vpop.f32.mrb[0].mxu0
        %v1005 = vadd.f32 0.0, %v1004
        %v1006 = vpop.f32.mrb[0].mxu0
        %v1007 = vpop.f32.mrb[0].mxu0
        %v1008 = vpop.f32.mrb[0].mxu0
        %1009 = vdwg.mxu0
        %v1011 = vsel %vm963, %v956, 0
        %v1014 = vsel %vm963, %v960, 0
        %1016 = vmatprep.subr.bf16.mxu0 0
        %1017 = vmatpush1.bf16.xpose.msra.mxu0 %v1014
        %1018 = vmatprep.subr.bf16.mxu0 0
        %1019 = vmatpush1.bf16.xpose.msra.mxu0 0
        %1020 = vmatprep.subr.bf16.mxu0 0
        %1021 = vmatpush1.bf16.xpose.msra.mxu0 0
        %1022 = vmatprep.subr.bf16.mxu0 0
        %1023 = vmatpush1.bf16.xpose.msra.mxu0 0
        %1024 = vmatprep.subr.bf16.mxu0 0
        %1025 = vmatpush1.bf16.xpose.msra.mxu0 0
        %1026 = vmatprep.subr.bf16.mxu0 0
        %1027 = vmatpush1.bf16.xpose.msra.mxu0 0
        %1028 = vmatprep.subr.bf16.mxu0 0
        %1029 = vmatpush1.bf16.xpose.msra.mxu0 0
        %1030 = vmatprep.subr.bf16.mxu0 0
        %1031 = vmatpush1.bf16.xpose.msra.mxu0 0
        %1032 = vmatprep.subr.bf16.mxu0 0
        %1033 = vmatpush1.bf16.xpose.msra.mxu0 0
        %1034 = vmatprep.subr.bf16.mxu0 0
        %1035 = vmatpush1.bf16.xpose.msra.mxu0 0
        %1036 = vmatprep.subr.bf16.mxu0 0
        %1037 = vmatpush1.bf16.xpose.msra.mxu0 0
        %1038 = vmatprep.subr.bf16.mxu0 0
        %1039 = vmatpush1.bf16.xpose.msra.mxu0 0
        %1040 = vmatprep.subr.bf16.mxu0 0
        %1041 = vmatpush1.bf16.xpose.msra.mxu0 0
        %1042 = vmatprep.subr.bf16.mxu0 0
        %1043 = vmatpush1.bf16.xpose.msra.mxu0 0
        %1044 = vmatprep.subr.bf16.mxu0 0
        %1045 = vmatpush1.bf16.xpose.msra.mxu0 0
        %1046 = vmatprep.subr.bf16.mxu0 0
        %1047 = vmatpush1.bf16.xpose.msra.mxu0 0
        %1048 = vmatprep.mubr.bf16.mxu0 0
        %1049 = vmatmul.mubr.bf16.gmra.mrb[0].mxu0 %v1011
        %v1050 = vpop.f32.mrb[0].mxu0
        %v1051 = vadd.f32 0.0, %v1050
        %v1052 = vpop.f32.mrb[0].mxu0
        %v1053 = vpop.f32.mrb[0].mxu0
        %v1054 = vpop.f32.mrb[0].mxu0
        %1055 = vdwg.mxu0
        %v1057 = vsel %vm963, %v957, 0
        %v1060 = vsel %vm963, %v961, 0
        %1062 = vmatprep.subr.bf16.mxu0 0
        %1063 = vmatpush1.bf16.xpose.msra.mxu0 %v1060
        %1064 = vmatprep.subr.bf16.mxu0 0
        %1065 = vmatpush1.bf16.xpose.msra.mxu0 0
        %1066 = vmatprep.subr.bf16.mxu0 0
        %1067 = vmatpush1.bf16.xpose.msra.mxu0 0
        %1068 = vmatprep.subr.bf16.mxu0 0
        %1069 = vmatpush1.bf16.xpose.msra.mxu0 0
        %1070 = vmatprep.subr.bf16.mxu0 0
        %1071 = vmatpush1.bf16.xpose.msra.mxu0 0
        %1072 = vmatprep.subr.bf16.mxu0 0
        %1073 = vmatpush1.bf16.xpose.msra.mxu0 0
        %1074 = vmatprep.subr.bf16.mxu0 0
        %1075 = vmatpush1.bf16.xpose.msra.mxu0 0
        %1076 = vmatprep.subr.bf16.mxu0 0
        %1077 = vmatpush1.bf16.xpose.msra.mxu0 0
        %1078 = vmatprep.subr.bf16.mxu0 0
        %1079 = vmatpush1.bf16.xpose.msra.mxu0 0
        %1080 = vmatprep.subr.bf16.mxu0 0
        %1081 = vmatpush1.bf16.xpose.msra.mxu0 0
        %1082 = vmatprep.subr.bf16.mxu0 0
        %1083 = vmatpush1.bf16.xpose.msra.mxu0 0
        %1084 = vmatprep.subr.bf16.mxu0 0
        %1085 = vmatpush1.bf16.xpose.msra.mxu0 0
        %1086 = vmatprep.subr.bf16.mxu0 0
        %1087 = vmatpush1.bf16.xpose.msra.mxu0 0
        %1088 = vmatprep.subr.bf16.mxu0 0
        %1089 = vmatpush1.bf16.xpose.msra.mxu0 0
        %1090 = vmatprep.subr.bf16.mxu0 0
        %1091 = vmatpush1.bf16.xpose.msra.mxu0 0
        %1092 = vmatprep.subr.bf16.mxu0 0
        %1093 = vmatpush1.bf16.xpose.msra.mxu0 0
        %1094 = vmatprep.mubr.bf16.mxu0 0
        %1095 = vmatmul.mubr.bf16.gmra.mrb[0].mxu0 %v1057
        %v1096 = vpop.f32.mrb[0].mxu0
        %v1097 = vadd.f32 0.0, %v1096
        %v1098 = vpop.f32.mrb[0].mxu0
        %v1099 = vpop.f32.mrb[0].mxu0
        %v1100 = vpop.f32.mrb[0].mxu0
        %1101 = vdwg.mxu0
        %v1103 = vsel %vm963, %v958, 0
        %v1106 = vsel %vm963, %v962, 0
        %1108 = vmatprep.subr.bf16.mxu0 0
        %1109 = vmatpush1.bf16.xpose.msra.mxu0 %v1106
        %1110 = vmatprep.subr.bf16.mxu0 0
        %1111 = vmatpush1.bf16.xpose.msra.mxu0 0
        %1112 = vmatprep.subr.bf16.mxu0 0
        %1113 = vmatpush1.bf16.xpose.msra.mxu0 0
        %1114 = vmatprep.subr.bf16.mxu0 0
        %1115 = vmatpush1.bf16.xpose.msra.mxu0 0
        %1116 = vmatprep.subr.bf16.mxu0 0
        %1117 = vmatpush1.bf16.xpose.msra.mxu0 0
        %1118 = vmatprep.subr.bf16.mxu0 0
        %1119 = vmatpush1.bf16.xpose.msra.mxu0 0
        %1120 = vmatprep.subr.bf16.mxu0 0
        %1121 = vmatpush1.bf16.xpose.msra.mxu0 0
        %1122 = vmatprep.subr.bf16.mxu0 0
        %1123 = vmatpush1.bf16.xpose.msra.mxu0 0
        %1124 = vmatprep.subr.bf16.mxu0 0
        %1125 = vmatpush1.bf16.xpose.msra.mxu0 0
        %1126 = vmatprep.subr.bf16.mxu0 0
        %1127 = vmatpush1.bf16.xpose.msra.mxu0 0
        %1128 = vmatprep.subr.bf16.mxu0 0
        %1129 = vmatpush1.bf16.xpose.msra.mxu0 0
        %1130 = vmatprep.subr.bf16.mxu0 0
        %1131 = vmatpush1.bf16.xpose.msra.mxu0 0
        %1132 = vmatprep.subr.bf16.mxu0 0
        %1133 = vmatpush1.bf16.xpose.msra.mxu0 0
        %1134 = vmatprep.subr.bf16.mxu0 0
        %1135 = vmatpush1.bf16.xpose.msra.mxu0 0
        %1136 = vmatprep.subr.bf16.mxu0 0
        %1137 = vmatpush1.bf16.xpose.msra.mxu0 0
        %1138 = vmatprep.subr.bf16.mxu0 0
        %1139 = vmatpush1.bf16.xpose.msra.mxu0 0
        %1140 = vmatprep.mubr.bf16.mxu0 0
        %1141 = vmatmul.mubr.bf16.gmra.mrb[0].mxu0 %v1103
        %v1142 = vpop.f32.mrb[0].mxu0
        %v1143 = vadd.f32 0.0, %v1142
        %v1144 = vpop.f32.mrb[0].mxu0
        %v1145 = vpop.f32.mrb[0].mxu0
        %v1146 = vpop.f32.mrb[0].mxu0
        %1147 = vdwg.mxu0
        %vm1148 = vcmask 130048
        %v1149 = vsel %vm1148, %v1005, -inf
        %1150 = vmax.xlane.f32.xlu0 %v1149
        %v1151 = vpop.xlane.xlu0 %1150
        %v1152 = vsel %vm1148, %v1051, -inf
        %1153 = vmax.xlane.f32.xlu0 %v1152
        %v1154 = vpop.xlane.xlu0 %1153
        %v1155 = vsel %vm1148, %v1097, -inf
        %1156 = vmax.xlane.f32.xlu0 %v1155
        %v1157 = vpop.xlane.xlu0 %1156
        %v1158 = vsel %vm1148, %v1143, -inf
        %1159 = vmax.xlane.f32.xlu0 %v1158
        %v1160 = vpop.xlane.xlu0 %1159
        %v1161 = vsub.f32 %v1005, %v1151
        %v1162 = vsub.f32 %v1051, %v1154
        %v1163 = vsub.f32 %v1097, %v1157
        %v1164 = vsub.f32 %v1143, %v1160
        %v1165 = vmul.f32 %v1161, 1.442695
        %v1166 = vpow.pop %v1165
        %v1167 = vmul.f32 %v1162, 1.442695
        %v1168 = vpow.pop %v1167
        %v1169 = vmul.f32 %v1163, 1.442695
        %v1170 = vpow.pop %v1169
        %v1171 = vmul.f32 %v1164, 1.442695
        %v1172 = vpow.pop %v1171
        %v1173 = vsel %vm1148, %v1166, 0.0
        %1174 = vadd.xlane.f32.xlu0 %v1173
        %v1175 = vpop.xlane.xlu0 %1174
        %v1176 = vsel %vm1148, %v1168, 0.0
        %1177 = vadd.xlane.f32.xlu0 %v1176
        %v1178 = vpop.xlane.xlu0 %1177
        %v1179 = vsel %vm1148, %v1170, 0.0
        %1180 = vadd.xlane.f32.xlu0 %v1179
        %v1181 = vpop.xlane.xlu0 %1180
        %v1182 = vsel %vm1148, %v1172, 0.0
        %1183 = vadd.xlane.f32.xlu0 %v1182
        %v1184 = vpop.xlane.xlu0 %1183
        %v1185 = vrcp.pop %v1175
        %v1186 = vrcp.pop %v1178
        %v1187 = vrcp.pop %v1181
        %v1188 = vrcp.pop %v1184
        %v1189 = vmul.f32 %v1166, %v1185
        %v1190 = vmul.f32 %v1168, %v1186
        %v1191 = vmul.f32 %v1170, %v1187
        %v1192 = vmul.f32 %v1172, %v1188
        %v1193 = vpack.c.bf16 %v1189, %v1189
        %v1194 = vpack.c.bf16 %v1190, %v1190
        %v1195 = vpack.c.bf16 %v1191, %v1191
        %v1196 = vpack.c.bf16 %v1192, %v1192
        %v1197 = vld [vmem:[#allocation3] sm:$0xff]
        %v1198 = vld [vmem:[#allocation3 + $0x8] sm:$0xff]
        %v1199 = vld [vmem:[#allocation3 + $0x10] sm:$0xff]
        %v1200 = vld [vmem:[#allocation3 + $0x18] sm:$0xff]
        %v1202 = vsel %vm1148, %v1193, 0
        %1204 = vmatprep.subr.bf16.mxu0 0
        %1205 = vmatpush1.bf16.msra.mxu0 %v1197
        %1206 = vmatprep.subr.bf16.mxu0 0
        %1207 = vmatpush1.bf16.msra.mxu0 0
        %1208 = vmatprep.subr.bf16.mxu0 0
        %1209 = vmatpush1.bf16.msra.mxu0 0
        %1210 = vmatprep.subr.bf16.mxu0 0
        %1211 = vmatpush1.bf16.msra.mxu0 0
        %1212 = vmatprep.subr.bf16.mxu0 0
        %1213 = vmatpush1.bf16.msra.mxu0 0
        %1214 = vmatprep.subr.bf16.mxu0 0
        %1215 = vmatpush1.bf16.msra.mxu0 0
        %1216 = vmatprep.subr.bf16.mxu0 0
        %1217 = vmatpush1.bf16.msra.mxu0 0
        %1218 = vmatprep.subr.bf16.mxu0 0
        %1219 = vmatpush1.bf16.msra.mxu0 0
        %1220 = vmatprep.subr.bf16.mxu0 0
        %1221 = vmatpush1.bf16.msra.mxu0 0
        %1222 = vmatprep.subr.bf16.mxu0 0
        %1223 = vmatpush1.bf16.msra.mxu0 0
        %1224 = vmatprep.subr.bf16.mxu0 0
        %1225 = vmatpush1.bf16.msra.mxu0 0
        %1226 = vmatprep.subr.bf16.mxu0 0
        %1227 = vmatpush1.bf16.msra.mxu0 0
        %1228 = vmatprep.subr.bf16.mxu0 0
        %1229 = vmatpush1.bf16.msra.mxu0 0
        %1230 = vmatprep.subr.bf16.mxu0 0
        %1231 = vmatpush1.bf16.msra.mxu0 0
        %1232 = vmatprep.subr.bf16.mxu0 0
        %1233 = vmatpush1.bf16.msra.mxu0 0
        %1234 = vmatprep.subr.bf16.mxu0 0
        %1235 = vmatpush1.bf16.msra.mxu0 0
        %1236 = vmatprep.mubr.bf16.mxu0 0
        %1237 = vmatmul.mubr.bf16.gmra.mrb[0].mxu0 %v1202
        %v1238 = vpop.f32.mrb[0].mxu0
        %v1239 = vadd.f32 0.0, %v1238
        %v1240 = vpop.f32.mrb[0].mxu0
        %v1241 = vpop.f32.mrb[0].mxu0
        %v1242 = vpop.f32.mrb[0].mxu0
        %1243 = vdwg.mxu0
        %v1245 = vsel %vm1148, %v1194, 0
        %1247 = vmatprep.subr.bf16.mxu0 0
        %1248 = vmatpush1.bf16.msra.mxu0 %v1198
        %1249 = vmatprep.subr.bf16.mxu0 0
        %1250 = vmatpush1.bf16.msra.mxu0 0
        %1251 = vmatprep.subr.bf16.mxu0 0
        %1252 = vmatpush1.bf16.msra.mxu0 0
        %1253 = vmatprep.subr.bf16.mxu0 0
        %1254 = vmatpush1.bf16.msra.mxu0 0
        %1255 = vmatprep.subr.bf16.mxu0 0
        %1256 = vmatpush1.bf16.msra.mxu0 0
        %1257 = vmatprep.subr.bf16.mxu0 0
        %1258 = vmatpush1.bf16.msra.mxu0 0
        %1259 = vmatprep.subr.bf16.mxu0 0
        %1260 = vmatpush1.bf16.msra.mxu0 0
        %1261 = vmatprep.subr.bf16.mxu0 0
        %1262 = vmatpush1.bf16.msra.mxu0 0
        %1263 = vmatprep.subr.bf16.mxu0 0
        %1264 = vmatpush1.bf16.msra.mxu0 0
        %1265 = vmatprep.subr.bf16.mxu0 0
        %1266 = vmatpush1.bf16.msra.mxu0 0
        %1267 = vmatprep.subr.bf16.mxu0 0
        %1268 = vmatpush1.bf16.msra.mxu0 0
        %1269 = vmatprep.subr.bf16.mxu0 0
        %1270 = vmatpush1.bf16.msra.mxu0 0
        %1271 = vmatprep.subr.bf16.mxu0 0
        %1272 = vmatpush1.bf16.msra.mxu0 0
        %1273 = vmatprep.subr.bf16.mxu0 0
        %1274 = vmatpush1.bf16.msra.mxu0 0
        %1275 = vmatprep.subr.bf16.mxu0 0
        %1276 = vmatpush1.bf16.msra.mxu0 0
        %1277 = vmatprep.subr.bf16.mxu0 0
        %1278 = vmatpush1.bf16.msra.mxu0 0
        %1279 = vmatprep.mubr.bf16.mxu0 0
        %1280 = vmatmul.mubr.bf16.gmra.mrb[0].mxu0 %v1245
        %v1281 = vpop.f32.mrb[0].mxu0
        %v1282 = vadd.f32 0.0, %v1281
        %v1283 = vpop.f32.mrb[0].mxu0
        %v1284 = vpop.f32.mrb[0].mxu0
        %v1285 = vpop.f32.mrb[0].mxu0
        %1286 = vdwg.mxu0
        %v1288 = vsel %vm1148, %v1195, 0
        %1290 = vmatprep.subr.bf16.mxu0 0
        %1291 = vmatpush1.bf16.msra.mxu0 %v1199
        %1292 = vmatprep.subr.bf16.mxu0 0
        %1293 = vmatpush1.bf16.msra.mxu0 0
        %1294 = vmatprep.subr.bf16.mxu0 0
        %1295 = vmatpush1.bf16.msra.mxu0 0
        %1296 = vmatprep.subr.bf16.mxu0 0
        %1297 = vmatpush1.bf16.msra.mxu0 0
        %1298 = vmatprep.subr.bf16.mxu0 0
        %1299 = vmatpush1.bf16.msra.mxu0 0
        %1300 = vmatprep.subr.bf16.mxu0 0
        %1301 = vmatpush1.bf16.msra.mxu0 0
        %1302 = vmatprep.subr.bf16.mxu0 0
        %1303 = vmatpush1.bf16.msra.mxu0 0
        %1304 = vmatprep.subr.bf16.mxu0 0
        %1305 = vmatpush1.bf16.msra.mxu0 0
        %1306 = vmatprep.subr.bf16.mxu0 0
        %1307 = vmatpush1.bf16.msra.mxu0 0
        %1308 = vmatprep.subr.bf16.mxu0 0
        %1309 = vmatpush1.bf16.msra.mxu0 0
        %1310 = vmatprep.subr.bf16.mxu0 0
        %1311 = vmatpush1.bf16.msra.mxu0 0
        %1312 = vmatprep.subr.bf16.mxu0 0
        %1313 = vmatpush1.bf16.msra.mxu0 0
        %1314 = vmatprep.subr.bf16.mxu0 0
        %1315 = vmatpush1.bf16.msra.mxu0 0
        %1316 = vmatprep.subr.bf16.mxu0 0
        %1317 = vmatpush1.bf16.msra.mxu0 0
        %1318 = vmatprep.subr.bf16.mxu0 0
        %1319 = vmatpush1.bf16.msra.mxu0 0
        %1320 = vmatprep.subr.bf16.mxu0 0
        %1321 = vmatpush1.bf16.msra.mxu0 0
        %1322 = vmatprep.mubr.bf16.mxu0 0
        %1323 = vmatmul.mubr.bf16.gmra.mrb[0].mxu0 %v1288
        %v1324 = vpop.f32.mrb[0].mxu0
        %v1325 = vadd.f32 0.0, %v1324
        %v1326 = vpop.f32.mrb[0].mxu0
        %v1327 = vpop.f32.mrb[0].mxu0
        %v1328 = vpop.f32.mrb[0].mxu0
        %1329 = vdwg.mxu0
        %v1331 = vsel %vm1148, %v1196, 0
        %1333 = vmatprep.subr.bf16.mxu0 0
        %1334 = vmatpush1.bf16.msra.mxu0 %v1200
        %1335 = vmatprep.subr.bf16.mxu0 0
        %1336 = vmatpush1.bf16.msra.mxu0 0
        %1337 = vmatprep.subr.bf16.mxu0 0
        %1338 = vmatpush1.bf16.msra.mxu0 0
        %1339 = vmatprep.subr.bf16.mxu0 0
        %1340 = vmatpush1.bf16.msra.mxu0 0
        %1341 = vmatprep.subr.bf16.mxu0 0
        %1342 = vmatpush1.bf16.msra.mxu0 0
        %1343 = vmatprep.subr.bf16.mxu0 0
        %1344 = vmatpush1.bf16.msra.mxu0 0
        %1345 = vmatprep.subr.bf16.mxu0 0
        %1346 = vmatpush1.bf16.msra.mxu0 0
        %1347 = vmatprep.subr.bf16.mxu0 0
        %1348 = vmatpush1.bf16.msra.mxu0 0
        %1349 = vmatprep.subr.bf16.mxu0 0
        %1350 = vmatpush1.bf16.msra.mxu0 0
        %1351 = vmatprep.subr.bf16.mxu0 0
        %1352 = vmatpush1.bf16.msra.mxu0 0
        %1353 = vmatprep.subr.bf16.mxu0 0
        %1354 = vmatpush1.bf16.msra.mxu0 0
        %1355 = vmatprep.subr.bf16.mxu0 0
        %1356 = vmatpush1.bf16.msra.mxu0 0
        %1357 = vmatprep.subr.bf16.mxu0 0
        %1358 = vmatpush1.bf16.msra.mxu0 0
        %1359 = vmatprep.subr.bf16.mxu0 0
        %1360 = vmatpush1.bf16.msra.mxu0 0
        %1361 = vmatprep.subr.bf16.mxu0 0
        %1362 = vmatpush1.bf16.msra.mxu0 0
        %1363 = vmatprep.subr.bf16.mxu0 0
        %1364 = vmatpush1.bf16.msra.mxu0 0
        %1365 = vmatprep.mubr.bf16.mxu0 0
        %1366 = vmatmul.mubr.bf16.gmra.mrb[0].mxu0 %v1331
        %v1367 = vpop.f32.mrb[0].mxu0
        %v1368 = vadd.f32 0.0, %v1367
        %v1369 = vpop.f32.mrb[0].mxu0
        %v1370 = vpop.f32.mrb[0].mxu0
        %v1371 = vpop.f32.mrb[0].mxu0
        %1372 = vdwg.mxu0
        %v1373 = vpack.c.bf16 %v1239, %v1239
        %1374 = vst.msk [vmem:[#allocation5] sm:$0xf] %vm935, %v1373
        %v1375 = vpack.c.bf16 %v1282, %v1282
        %v1377 = vunpack.c.l.b16 %v1375
        %v1378 = vpack.c.b16 %v1377, %v1377
        %1379 = vrot.lane.b32.xlu0 %v1378, 8
        %v1380 = vpop.permute.xlu0 %1379
        %vm1382 = vcmask 126016
        %1383 = vst.msk [vmem:[#allocation5] sm:$0xf] %vm1382, %v1380
        %v1384 = vpack.c.bf16 %v1325, %v1325
        %v1386 = vunpack.c.l.b16 %v1384
        %v1387 = vpack.c.b16 %v1386, %v1386
        %1388 = vrot.lane.b32.xlu0 %v1387, 16
        %v1389 = vpop.permute.xlu0 %1388
        %vm1391 = vcmask 191616
        %1392 = vst.msk [vmem:[#allocation5] sm:$0xf] %vm1391, %v1389
        %v1393 = vpack.c.bf16 %v1368, %v1368
        %v1395 = vunpack.c.l.b16 %v1393
        %v1396 = vpack.c.b16 %v1395, %v1395
        %1397 = vrot.lane.b32.xlu0 %v1396, 24
        %v1398 = vpop.permute.xlu0 %1397
        %vm1400 = vcmask 257216
        %1401 = vst.msk [vmem:[#allocation5] sm:$0xf] %vm1400, %v1398
        %v1402 = vld [vmem:[#allocation5] sm:$0xf]
        %v1403 = vld [vmem:[#allocation11] sm:$0xf]
        %v1404 = vld [vmem:[#allocation11 + $0x4] sm:$0xf]
        %v1405 = vld [vmem:[#allocation11 + $0x8] sm:$0xf]
        %v1406 = vld [vmem:[#allocation11 + $0xc] sm:$0xf]
        %v1407 = vld [vmem:[#allocation12] sm:$0x1]
        %v1409 = vlaneseq
        %v1410 = vshrl.u32 %v1409, 7
        %v1411 = vsub.s32 0, %v1410
        %v1412 = vrot.slane %v1407, %v1411
        %v1418 = vunpack.c.l.b16 %v1403
        %v1419 = vunpack.c.l.b16 %v1404
        %v1420 = vunpack.c.l.b16 %v1405
        %v1421 = vunpack.c.l.b16 %v1406
        %v1422 = vpack.c.b16 %v1419, %v1418
        %v1423 = vpack.c.b16 %v1421, %v1420
        %v1427 = vsel %vm889, %v1402, 0
        %1429 = vmatprep.subr.bf16.mxu0 0
        %1430 = vmatpush1.bf16.msra.mxu0 %v1422
        %1431 = vmatprep.subr.bf16.mxu0 0
        %1432 = vmatpush1.bf16.msra.mxu0 %v1423
        %1433 = vmatprep.subr.bf16.mxu0 0
        %1434 = vmatpush1.bf16.msra.mxu0 0
        %1435 = vmatprep.subr.bf16.mxu0 0
        %1436 = vmatpush1.bf16.msra.mxu0 0
        %1437 = vmatprep.subr.bf16.mxu0 0
        %1438 = vmatpush1.bf16.msra.mxu0 0
        %1439 = vmatprep.subr.bf16.mxu0 0
        %1440 = vmatpush1.bf16.msra.mxu0 0
        %1441 = vmatprep.subr.bf16.mxu0 0
        %1442 = vmatpush1.bf16.msra.mxu0 0
        %1443 = vmatprep.subr.bf16.mxu0 0
        %1444 = vmatpush1.bf16.msra.mxu0 0
        %1445 = vmatprep.subr.bf16.mxu0 0
        %1446 = vmatpush1.bf16.msra.mxu0 0
        %1447 = vmatprep.subr.bf16.mxu0 0
        %1448 = vmatpush1.bf16.msra.mxu0 0
        %1449 = vmatprep.subr.bf16.mxu0 0
        %1450 = vmatpush1.bf16.msra.mxu0 0
        %1451 = vmatprep.subr.bf16.mxu0 0
        %1452 = vmatpush1.bf16.msra.mxu0 0
        %1453 = vmatprep.subr.bf16.mxu0 0
        %1454 = vmatpush1.bf16.msra.mxu0 0
        %1455 = vmatprep.subr.bf16.mxu0 0
        %1456 = vmatpush1.bf16.msra.mxu0 0
        %1457 = vmatprep.subr.bf16.mxu0 0
        %1458 = vmatpush1.bf16.msra.mxu0 0
        %1459 = vmatprep.subr.bf16.mxu0 0
        %1460 = vmatpush1.bf16.msra.mxu0 0
        %1461 = vmatprep.mubr.bf16.mxu0 0
        %1462 = vmatmul.mubr.bf16.gmra.mrb[0].mxu0 %v1427
        %v1463 = vpop.f32.mrb[0].mxu0
        %v1464 = vadd.f32 %v1412, %v1463
        %v1465 = vpop.f32.mrb[0].mxu0
        %v1466 = vpop.f32.mrb[0].mxu0
        %v1467 = vpop.f32.mrb[0].mxu0
        %1468 = vdwg.mxu0
        %v1469 = vadd.f32 %v864, %v1464
        %v1470 = vld [vmem:[%s10] sm:$0x1]
        %v1471 = vld [vmem:[%s11] sm:$0x1]
        %v1472 = vsel %vm889, %v1469, 0.0
        %1473 = vadd.xlane.f32.xlu0 %v1472
        %v1474 = vpop.xlane.xlu0 %1473
        %v1475 = vrcp.pop 32.0
        %v1476 = vmul.f32 %v1474, %v1475
        %v1477 = vsub.f32 %v1469, %v1476
        %v1478 = vmul.f32 %v1477, %v1477
        %v1479 = vsel %vm889, %v1478, 0.0
        %1480 = vadd.xlane.f32.xlu0 %v1479
        %v1481 = vpop.xlane.xlu0 %1480
        %v1482 = vmul.f32 %v1481, %v1475
        %v1483 = vadd.f32 %v1482, 1e-05
        %v1484 = vrsqrt.pop %v1483
        %v1485 = vmul.f32 %v1477, %v1484
        %v1487 = vlaneseq
        %v1488 = vshrl.u32 %v1487, 7
        %v1489 = vsub.s32 0, %v1488
        %v1490 = vrot.slane %v1470, %v1489
        %v1492 = vmul.f32 %v1485, %v1490
        %v1494 = vlaneseq
        %v1495 = vshrl.u32 %v1494, 7
        %v1496 = vsub.s32 0, %v1495
        %v1497 = vrot.slane %v1471, %v1496
        %v1499 = vadd.f32 %v1492, %v1497
        %v1500 = vpack.c.bf16 %v1499, %v1499
        %v1501 = vld [vmem:[%s12] sm:$0xf]
        %v1502 = vld [vmem:[%s12 + $0x4] sm:$0xf]
        %v1503 = vld [vmem:[%s12 + $0x8] sm:$0xf]
        %v1504 = vld [vmem:[%s12 + $0xc] sm:$0xf]
        %v1505 = vld [vmem:[%s13] sm:$0x1]
        %v1507 = vlaneseq
        %v1508 = vshrl.u32 %v1507, 7
        %v1509 = vsub.s32 0, %v1508
        %v1510 = vrot.slane %v1505, %v1509
        %v1516 = vunpack.c.l.b16 %v1501
        %v1517 = vunpack.c.l.b16 %v1502
        %v1518 = vunpack.c.l.b16 %v1503
        %v1519 = vunpack.c.l.b16 %v1504
        %v1520 = vpack.c.b16 %v1517, %v1516
        %v1521 = vpack.c.b16 %v1519, %v1518
        %v1525 = vsel %vm889, %v1500, 0
        %1527 = vmatprep.subr.bf16.mxu0 0
        %1528 = vmatpush1.bf16.msra.mxu0 %v1520
        %1529 = vmatprep.subr.bf16.mxu0 0
        %1530 = vmatpush1.bf16.msra.mxu0 %v1521
        %1531 = vmatprep.subr.bf16.mxu0 0
        %1532 = vmatpush1.bf16.msra.mxu0 0
        %1533 = vmatprep.subr.bf16.mxu0 0
        %1534 = vmatpush1.bf16.msra.mxu0 0
        %1535 = vmatprep.subr.bf16.mxu0 0
        %1536 = vmatpush1.bf16.msra.mxu0 0
        %1537 = vmatprep.subr.bf16.mxu0 0
        %1538 = vmatpush1.bf16.msra.mxu0 0
        %1539 = vmatprep.subr.bf16.mxu0 0
        %1540 = vmatpush1.bf16.msra.mxu0 0
        %1541 = vmatprep.subr.bf16.mxu0 0
        %1542 = vmatpush1.bf16.msra.mxu0 0
        %1543 = vmatprep.subr.bf16.mxu0 0
        %1544 = vmatpush1.bf16.msra.mxu0 0
        %1545 = vmatprep.subr.bf16.mxu0 0
        %1546 = vmatpush1.bf16.msra.mxu0 0
        %1547 = vmatprep.subr.bf16.mxu0 0
        %1548 = vmatpush1.bf16.msra.mxu0 0
        %1549 = vmatprep.subr.bf16.mxu0 0
        %1550 = vmatpush1.bf16.msra.mxu0 0
        %1551 = vmatprep.subr.bf16.mxu0 0
        %1552 = vmatpush1.bf16.msra.mxu0 0
        %1553 = vmatprep.subr.bf16.mxu0 0
        %1554 = vmatpush1.bf16.msra.mxu0 0
        %1555 = vmatprep.subr.bf16.mxu0 0
        %1556 = vmatpush1.bf16.msra.mxu0 0
        %1557 = vmatprep.subr.bf16.mxu0 0
        %1558 = vmatpush1.bf16.msra.mxu0 0
        %1559 = vmatprep.mubr.bf16.mxu0 0
        %1560 = vmatmul.mubr.bf16.gmra.mrb[0].mxu0 %v1525
        %v1561 = vpop.f32.mrb[0].mxu0
        %v1562 = vadd.f32 %v1510, %v1561
        %v1563 = vpop.f32.mrb[0].mxu0
        %v1564 = vpop.f32.mrb[0].mxu0
        %v1565 = vpop.f32.mrb[0].mxu0
        %1566 = vdwg.mxu0
        %v1567 = vmax.f32 %v1562, 0.0
        %v1568 = vpack.c.bf16 %v1567, %v1567
        %v1569 = vld [vmem:[%s14] sm:$0xf]
        %v1570 = vld [vmem:[%s14 + $0x4] sm:$0xf]
        %v1571 = vld [vmem:[%s14 + $0x8] sm:$0xf]
        %v1572 = vld [vmem:[%s14 + $0xc] sm:$0xf]
        %v1573 = vld [vmem:[%s14 + $0x10] sm:$0xf]
        %v1574 = vld [vmem:[%s14 + $0x14] sm:$0xf]
        %v1575 = vld [vmem:[%s14 + $0x18] sm:$0xf]
        %v1576 = vld [vmem:[%s14 + $0x1c] sm:$0xf]
        %v1577 = vld [vmem:[%s14 + $0x20] sm:$0xf]
        %v1578 = vld [vmem:[%s14 + $0x24] sm:$0xf]
        %v1579 = vld [vmem:[%s14 + $0x28] sm:$0xf]
        %v1580 = vld [vmem:[%s14 + $0x2c] sm:$0xf]
        %v1581 = vld [vmem:[%s14 + $0x30] sm:$0xf]
        %v1582 = vld [vmem:[%s14 + $0x34] sm:$0xf]
        %v1583 = vld [vmem:[%s14 + $0x38] sm:$0xf]
        %v1584 = vld [vmem:[%s14 + $0x3c] sm:$0xf]
        %v1585 = vld [vmem:[%s15] sm:$0x1]
        %v1587 = vlaneseq
        %v1588 = vshrl.u32 %v1587, 7
        %v1589 = vsub.s32 0, %v1588
        %v1590 = vrot.slane %v1585, %v1589
        %v1608 = vunpack.c.l.b16 %v1569
        %v1609 = vunpack.c.l.b16 %v1570
        %v1610 = vunpack.c.l.b16 %v1571
        %v1611 = vunpack.c.l.b16 %v1572
        %v1612 = vunpack.c.l.b16 %v1573
        %v1613 = vunpack.c.l.b16 %v1574
        %v1614 = vunpack.c.l.b16 %v1575
        %v1615 = vunpack.c.l.b16 %v1576
        %v1616 = vunpack.c.l.b16 %v1577
        %v1617 = vunpack.c.l.b16 %v1578
        %v1618 = vunpack.c.l.b16 %v1579
        %v1619 = vunpack.c.l.b16 %v1580
        %v1620 = vunpack.c.l.b16 %v1581
        %v1621 = vunpack.c.l.b16 %v1582
        %v1622 = vunpack.c.l.b16 %v1583
        %v1623 = vunpack.c.l.b16 %v1584
        %v1624 = vpack.c.b16 %v1609, %v1608
        %v1625 = vpack.c.b16 %v1611, %v1610
        %v1626 = vpack.c.b16 %v1613, %v1612
        %v1627 = vpack.c.b16 %v1615, %v1614
        %v1628 = vpack.c.b16 %v1617, %v1616
        %v1629 = vpack.c.b16 %v1619, %v1618
        %v1630 = vpack.c.b16 %v1621, %v1620
        %v1631 = vpack.c.b16 %v1623, %v1622
        %1640 = vmatprep.subr.bf16.mxu0 0
        %1641 = vmatpush1.bf16.msra.mxu0 %v1624
        %1642 = vmatprep.subr.bf16.mxu0 0
        %1643 = vmatpush1.bf16.msra.mxu0 %v1625
        %1644 = vmatprep.subr.bf16.mxu0 0
        %1645 = vmatpush1.bf16.msra.mxu0 %v1626
        %1646 = vmatprep.subr.bf16.mxu0 0
        %1647 = vmatpush1.bf16.msra.mxu0 %v1627
        %1648 = vmatprep.subr.bf16.mxu0 0
        %1649 = vmatpush1.bf16.msra.mxu0 %v1628
        %1650 = vmatprep.subr.bf16.mxu0 0
        %1651 = vmatpush1.bf16.msra.mxu0 %v1629
        %1652 = vmatprep.subr.bf16.mxu0 0
        %1653 = vmatpush1.bf16.msra.mxu0 %v1630
        %1654 = vmatprep.subr.bf16.mxu0 0
        %1655 = vmatpush1.bf16.msra.mxu0 %v1631
        %1656 = vmatprep.subr.bf16.mxu0 0
        %1657 = vmatpush1.bf16.msra.mxu0 0
        %1658 = vmatprep.subr.bf16.mxu0 0
        %1659 = vmatpush1.bf16.msra.mxu0 0
        %1660 = vmatprep.subr.bf16.mxu0 0
        %1661 = vmatpush1.bf16.msra.mxu0 0
        %1662 = vmatprep.subr.bf16.mxu0 0
        %1663 = vmatpush1.bf16.msra.mxu0 0
        %1664 = vmatprep.subr.bf16.mxu0 0
        %1665 = vmatpush1.bf16.msra.mxu0 0
        %1666 = vmatprep.subr.bf16.mxu0 0
        %1667 = vmatpush1.bf16.msra.mxu0 0
        %1668 = vmatprep.subr.bf16.mxu0 0
        %1669 = vmatpush1.bf16.msra.mxu0 0
        %1670 = vmatprep.subr.bf16.mxu0 0
        %1671 = vmatpush1.bf16.msra.mxu0 0
        %1672 = vmatprep.mubr.bf16.mxu0 0
        %1673 = vmatmul.mubr.bf16.gmra.mrb[0].mxu0 %v1568
        %v1674 = vpop.f32.mrb[0].mxu0
        %v1675 = vadd.f32 %v1590, %v1674
        %v1676 = vpop.f32.mrb[0].mxu0
        %v1677 = vpop.f32.mrb[0].mxu0
        %v1678 = vpop.f32.mrb[0].mxu0
        %1679 = vdwg.mxu0
        %v1680 = vadd.f32 %v1499, %v1675
        %v1681 = vld [vmem:[%s16] sm:$0x1]
        %v1682 = vld [vmem:[%s17] sm:$0x1]
        %v1683 = vsel %vm889, %v1680, 0.0
        %1684 = vadd.xlane.f32.xlu0 %v1683
        %v1685 = vpop.xlane.xlu0 %1684
        %v1686 = vmul.f32 %v1685, %v1475
        %v1687 = vsub.f32 %v1680, %v1686
        %v1688 = vmul.f32 %v1687, %v1687
        %v1689 = vsel %vm889, %v1688, 0.0
        %1690 = vadd.xlane.f32.xlu0 %v1689
        %v1691 = vpop.xlane.xlu0 %1690
        %v1692 = vmul.f32 %v1691, %v1475
        %v1693 = vadd.f32 %v1692, 1e-05
        %v1694 = vrsqrt.pop %v1693
        %v1695 = vmul.f32 %v1687, %v1694
        %v1697 = vlaneseq
        %v1698 = vshrl.u32 %v1697, 7
        %v1699 = vsub.s32 0, %v1698
        %v1700 = vrot.slane %v1681, %v1699
        %v1702 = vmul.f32 %v1695, %v1700
        %v1704 = vlaneseq
        %v1705 = vshrl.u32 %v1704, 7
        %v1706 = vsub.s32 0, %v1705
        %v1707 = vrot.slane %v1682, %v1706
        %v1709 = vadd.f32 %v1702, %v1707
        %1710 = vst.msk [vmem:[%s660] sm:$0xff] %vm889, %v1709
        %s1711 = sand.u32 %s447, 1
        %s1712 = scalar_lea.sflag [#allocation8], %s1711
        %s1713 = sand.u32 %s447, 1
        %s1714 = smul.addr %s1713, 8
        %s1715 = scalar_lea.vmem [#allocation14], %s1714
        // Predicated region
        $region113: #{tpu_custom_call.1} parent=91 // pred_check
          %p1716 = pneg %p457
        $region114: #{tpu_custom_call.1} parent=91 // pred_check_branch
          %1718 = sbr.rel (%p1716) target = $region116
        $region115: #{tpu_custom_call.1} parent=91 // pred_region
          %s1720 = ssub.s32 128, 128
          %1721 = vsyncadd %s1712, %s1720
          %s1722 = smul.addr %s39, 2
          %s1723 = sadd.s32 %s40, %s1722
          %s1724 = smul.addr %s1723, 128
          %s1725 = scalar_lea.hbm %s18, %s1724
          %s1727 = sshll.u32 %s1715, 4
          %s1728 = int_to_ptr.vmem [resolvable:$true] %s1727
          %1730 = dma.vmem_to_hbm [thread:$0]  %s1728, 128, %s1725, %s1712
        $region116: #{tpu_custom_call.1} parent=91 // pred_fallthru
          _
      $region92: #{tpu_custom_call.1} parent=5 // pred_fallthru
        _
      %p1731 = scmp.le.s32.totalorder 2, %s30
      // Predicated region
      $region117: #{tpu_custom_call.1} parent=5 // pred_check
        %p1732 = pneg %p1731
      $region118: #{tpu_custom_call.1} parent=5 // pred_check_branch
        %1734 = sbr.rel (%p1732) target = $region120
      $region119: #{tpu_custom_call.1} parent=5 // pred_region
        %s1735 = ssub.s32 %s30, 2
        // Predicated region
        $region121: #{tpu_custom_call.1} parent=119 // pred_check
          %p1736 = pneg %p463
        $region122: #{tpu_custom_call.1} parent=119 // pred_check_branch
          %1738 = sbr.rel (%p1736) target = $region124
        $region123: #{tpu_custom_call.1} parent=119 // pred_region
          %s1739 = sand.u32 %s448, 1
          %s1740 = scalar_lea.sflag [#allocation8], %s1739
          %s1741 = sand.u32 %s448, 1
          %s1742 = smul.addr %s1741, 8
          %s1743 = scalar_lea.vmem [#allocation14], %s1742
          %1744 = dma.done %s1740, 128
        $region124: #{tpu_custom_call.1} parent=119 // pred_fallthru
          _
      $region120: #{tpu_custom_call.1} parent=5 // pred_fallthru
        _
    $region6: #{tpu_custom_call.1} parent=1 // loop_footer
      %s34 = sadd.s32 1, %s30
    $region7: #{tpu_custom_call.1} parent=1 // loop_footer_branch
      %29 = sbr.rel target = $region3
    $region8: #{tpu_custom_call.1} parent=1 // loop_exit
      _
    %1745 = vsyncpa [#allocation7], 1
    %s1746 = scalar_lea.sflag [#allocation7], 1
    %1747 = vsyncpa %s1746, 1
    %1748 = vsyncpa [#allocation10], 1
    %1749 = vsyncpa [#allocation13], 1
    %1750 = vsyncpa [#allocation8], 1
    %s1751 = scalar_lea.sflag [#allocation8], 1
    %1752 = vsyncpa %s1751, 1

</llo_original>
